<compile_context>
chip_gen: v5e
topology: v5e:2x2
jax: 0.10.0
libtpu: 0.0.40
codegen_flags: <defaults>
</compile_context>

<pallas_src>
import functools

import jax
import jax.numpy as jnp
from jax.experimental import pallas as pl
from jax.experimental.pallas import tpu as pltpu


# --------------------------------------------------------------------------- #
# Kernel
# --------------------------------------------------------------------------- #
def _prenorm_xattn_kernel(xq_ref, xkv_ref, g_ref, b_ref,
                          wq_ref, wkv_ref, wo_ref, bo_ref, out_ref, *,
                          heads, dim_head, eps, block_b, nq, nkv, inner,
                          fuse_kv, compute_dtype, approx_recip):
    """One grid step = `block_b` batch elements, LN + cross-attention fused.

    xq_ref : (block_b*Nq,  dim)   -- already batch-folded by the wrapper
    xkv_ref: (block_b*Nkv, dim)
    wq_ref : (dim, inner)         -- softmax scale already folded in
    wkv_ref: (dim, 2*inner)       -- [Wk | Wv]
    wo_ref : (inner, dim_pad)     -- zero-padded to a multiple of 128 lanes
    bo_ref : (1, dim_pad)
    out_ref: (block_b*Nq, dim_pad)
    """
    # ---------------- PreNorm: LayerNorm over the feature axis (f32) --------
    xq = xq_ref[...].astype(jnp.float32)                    # (bb*Nq, dim)
    mean = jnp.mean(xq, axis=-1, keepdims=True)
    xc = xq - mean
    var = jnp.mean(xc * xc, axis=-1, keepdims=True)
    xn = xc * jax.lax.rsqrt(var + eps)
    xn = xn * g_ref[...] + b_ref[...]

    # ------------- Projections folded over the whole batch block ------------
    xq_c = xn.astype(compute_dtype)
    xkv_c = xkv_ref[...].astype(compute_dtype)
    q = jnp.dot(xq_c, wq_ref[...], preferred_element_type=jnp.float32)   # (bb*Nq, inner)

    if fuse_kv:
        # inner % 128 == 0: one matmul, 128-aligned lane slices of the result.
        kv = jnp.dot(xkv_c, wkv_ref[...], preferred_element_type=jnp.float32)
        k = kv[:, :inner]
        v = kv[:, inner:]
    else:
        # toy / non-aligned inner: keep two matmuls (slices taken on the small
        # weight once per grid step, not on the activations).
        wkv = wkv_ref[...]
        k = jnp.dot(xkv_c, wkv[:, :inner], preferred_element_type=jnp.float32)
        v = jnp.dot(xkv_c, wkv[:, inner:], preferred_element_type=jnp.float32)

    # ------------- Attention per (batch element, head) ----------------------
    # block_b and heads are small static ints -> Python-unrolled.
    # TODO(synk): for long Nkv, tile the kv axis with an online-softmax (flash)
    # inner loop instead of materializing the full (Nq, Nkv) scores per head.
    o_rows = []
    for i in range(block_b):
        q_i = q[i * nq:(i + 1) * nq]                         # (Nq,  inner)
        k_i = k[i * nkv:(i + 1) * nkv]                       # (Nkv, inner)
        v_i = v[i * nkv:(i + 1) * nkv]
        oh_list = []
        for h in range(heads):
            lo, hi = h * dim_head, (h + 1) * dim_head
            qh = q_i[:, lo:hi].astype(compute_dtype)         # (Nq,  dh)
            kh = k_i[:, lo:hi].astype(compute_dtype)         # (Nkv, dh)
            vh = v_i[:, lo:hi].astype(compute_dtype)         # (Nkv, dh)

            # q @ k^T without a transpose: contract the dh axes directly.
            # (scale already folded into Wq -> no extra VPU multiply here)
            dots = jax.lax.dot_general(
                qh, kh, (((1,), (1,)), ((), ())),
                preferred_element_type=jnp.float32)          # (Nq, Nkv) f32

            # numerically-stable softmax (f32)
            dots = dots - jnp.max(dots, axis=-1, keepdims=True)
            p = jnp.exp(dots)
            denom = jnp.sum(p, axis=-1, keepdims=True)
            attn = p * pl.reciprocal(denom, approx=approx_recip)

            oh_list.append(jnp.dot(attn.astype(compute_dtype), vh,
                                   preferred_element_type=jnp.float32))  # (Nq, dh)
        o_rows.append(jnp.concatenate(oh_list, axis=-1))     # (Nq, inner)

    o = jnp.concatenate(o_rows, axis=0) if block_b > 1 else o_rows[0]   # (bb*Nq, inner)

    # ------------- Single output projection + bias, single block store ------
    # Wo is padded to dim_pad lanes, so this store is an unmasked, lane-dense
    # vst for the whole block (padding sliced off in the wrapper).
    y = jnp.dot(o.astype(compute_dtype), wo_ref[...],
                preferred_element_type=jnp.float32) + bo_ref[...]
    out_ref[...] = y.astype(out_ref.dtype)


# --------------------------------------------------------------------------- #
# One-time parameter preparation (scale fold, kv fuse, Wo pad, bf16 cast)
# --------------------------------------------------------------------------- #
def prepare_prenorm_xattn_params(gamma, beta, wq, wk, wv, wo, bo, *,
                                 heads, use_bf16=True):
    """Prepare/cast parameters once (e.g. at load time), not per call."""
    dim, inner = wq.shape
    assert inner % heads == 0, "inner_dim must be divisible by heads"
    dim_head = inner // heads
    scale = float(dim_head) ** -0.5
    dim_out = wo.shape[1]
    dim_pad = ((dim_out + 127) // 128) * 128                 # lane-dense output

    cd = jnp.bfloat16 if use_bf16 else jnp.float32
    wq_s = (wq.astype(jnp.float32) * scale).astype(cd)       # scale folded in
    wkv = jnp.concatenate([wk, wv], axis=1).astype(cd)       # (dim, 2*inner)
    wo_p = jnp.pad(wo.astype(cd), ((0, 0), (0, dim_pad - dim_out)))
    bo_p = jnp.pad(bo.reshape(1, dim_out).astype(jnp.float32),
                   ((0, 0), (0, dim_pad - dim_out)))

    return dict(gamma=gamma.reshape(1, dim).astype(jnp.float32),
                beta=beta.reshape(1, dim).astype(jnp.float32),
                wq=wq_s, wkv=wkv, wo=wo_p, bo=bo_p,
                heads=heads, dim_head=dim_head, dim=dim, inner=inner,
                dim_out=dim_out, dim_pad=dim_pad, compute_dtype=cd)


def _tensorcores_per_device() -> int:
    """Best-effort TensorCores-per-device (megacore) query; 1 on unknowns."""
    try:
        kind = jax.devices()[0].device_kind.lower()
    except Exception:  # pragma: no cover
        return 1
    # Megacore generations (2 TCs share one Pallas grid): v4, v5p, v7x.
    return 2 if any(tag in kind for tag in ("v4", "v5p", "7")) else 1


# --------------------------------------------------------------------------- #
# Wrapper
# --------------------------------------------------------------------------- #
def prenorm_cross_attention(x_q, x_kv, params, *, eps=1e-5, block_b=None,
                            approx_recip=None):
    B, Nq, dim = x_q.shape
    Bk, Nkv, dim_kv = x_kv.shape
    assert B == Bk and dim == dim_kv == params["dim"]
    inner, dim_pad, dim_out = params["inner"], params["dim_pad"], params["dim_out"]
    cd = params["compute_dtype"]
    if approx_recip is None:                      # independent of the bf16 flag
        approx_recip = (cd == jnp.bfloat16)

    tcs = _tensorcores_per_device()
    if block_b is None:
        # Single-TC chips (v5e/v6e): fold the whole batch -> one grid step,
        # widest possible matmul M. Megacore chips (v4/v5p/v7x): 2 parallel
        # steps so each TensorCore gets one coarse block.
        block_b = B // 2 if (tcs >= 2 and B >= 2 and B % 2 == 0) else B
    assert B % block_b == 0
    n_steps = B // block_b
    fuse_kv = (inner % 128 == 0)

    kernel = functools.partial(
        _prenorm_xattn_kernel,
        heads=params["heads"], dim_head=params["dim_head"], eps=eps,
        block_b=block_b, nq=Nq, nkv=Nkv, inner=inner, fuse_kv=fuse_kv,
        compute_dtype=cd, approx_recip=approx_recip)

    # VMEM budget: v7x has 64 MiB/TC -> leave headroom; single-TC gens have
    # 128 MiB and can afford the full-batch block.
    vmem_limit = (48 if tcs >= 2 else 64) * 1024 * 1024

    # TODO(synk): at production dim/inner, single-buffer the grid-invariant
    # weight blocks (pipeline_mode=pl.Buffered(1), or DMA once into scratch);
    # at these toy sizes the extra double-buffered copies are a few KiB.
    out2 = pl.pallas_call(
        kernel,
        out_shape=jax.ShapeDtypeStruct((B * Nq, dim_pad), x_q.dtype),
        grid_spec=pltpu.PrefetchScalarGridSpec(
            num_scalar_prefetch=0,
            grid=(n_steps,),
            in_specs=[
                pl.BlockSpec((block_b * Nq, dim),  lambda s: (s, 0)),   # x_q 2-D
                pl.BlockSpec((block_b * Nkv, dim), lambda s: (s, 0)),   # x_kv 2-D
                pl.BlockSpec((1, dim),             lambda s: (0, 0)),   # gamma
                pl.BlockSpec((1, dim),             lambda s: (0, 0)),   # beta
                pl.BlockSpec((dim, inner),         lambda s: (0, 0)),   # wq (scaled)
                pl.BlockSpec((dim, 2 * inner),     lambda s: (0, 0)),   # [wk|wv]
                pl.BlockSpec((inner, dim_pad),     lambda s: (0, 0)),   # wo (padded)
                pl.BlockSpec((1, dim_pad),         lambda s: (0, 0)),   # bo (padded)
            ],
            out_specs=pl.BlockSpec((block_b * Nq, dim_pad), lambda s: (s, 0)),
        ),
        compiler_params=pltpu.CompilerParams(
            dimension_semantics=("parallel",),
            vmem_limit_bytes=vmem_limit),
    )(x_q.reshape(B * Nq, dim), x_kv.reshape(B * Nkv, dim),
      params["gamma"], params["beta"], params["wq"], params["wkv"],
      params["wo"], params["bo"])

    out = out2.reshape(B, Nq, dim_pad)
    return out[..., :dim_out] if dim_pad != dim_out else out


# --------------------------------------------------------------------------- #
# Pure-JAX reference (f32) of PreNorm(LayerNorm -> CrossAttention)
# --------------------------------------------------------------------------- #
def prenorm_cross_attention_ref(x_q, x_kv, gamma, beta, wq, wk, wv, wo, bo, *,
                                heads, eps=1e-5):
    B, Nq, dim = x_q.shape
    inner = wq.shape[1]
    dh = inner // heads
    scale = float(dh) ** -0.5

    mu = jnp.mean(x_q, axis=-1, keepdims=True)
    var = jnp.mean((x_q - mu) ** 2, axis=-1, keepdims=True)
    xn = (x_q - mu) / jnp.sqrt(var + eps) * gamma + beta

    q = xn @ wq
    k = x_kv @ wk
    v = x_kv @ wv

    def split(t):
        b, n, _ = t.shape
        return t.reshape(b, n, heads, dh).transpose(0, 2, 1, 3)  # (B, H, N, dh)

    qh, kh, vh = map(split, (q, k, v))
    dots = jnp.einsum('bhid,bhjd->bhij', qh, kh) * scale
    attn = jax.nn.softmax(dots, axis=-1)
    o = jnp.einsum('bhij,bhjd->bhid', attn, vh)
    o = o.transpose(0, 2, 1, 3).reshape(B, Nq, inner)
    return o @ wo + bo


# --------------------------------------------------------------------------- #
# Demo / correctness check
# --------------------------------------------------------------------------- #
if __name__ == "__main__":

    def run_case(key, *, B, Nq, Nkv, dim, heads, dim_head, f32_tol, bf16_tol):
        inner = heads * dim_head
        ks = jax.random.split(key, 9)
        x_q  = jax.random.normal(ks[0], (B, Nq, dim), dtype=jnp.float32)
        x_kv = jax.random.normal(ks[1], (B, Nkv, dim), dtype=jnp.float32)
        gamma = 1.0 + 0.1 * jax.random.normal(ks[2], (dim,), dtype=jnp.float32)
        beta  = 0.05 * jax.random.normal(ks[3], (dim,), dtype=jnp.float32)
        wq = jax.random.normal(ks[4], (dim, inner), dtype=jnp.float32) * dim ** -0.5
        wk = jax.random.normal(ks[5], (dim, inner), dtype=jnp.float32) * dim ** -0.5
        wv = jax.random.normal(ks[6], (dim, inner), dtype=jnp.float32) * dim ** -0.5
        wo = jax.random.normal(ks[7], (inner, dim), dtype=jnp.float32) * inner ** -0.5
        bo = 0.01 * jax.random.normal(ks[8], (dim,), dtype=jnp.float32)

        ref = prenorm_cross_attention_ref(x_q, x_kv, gamma, beta, wq, wk, wv, wo,
                                          bo, heads=heads)

        # Exact (f32) path: validates the kernel structure tightly.
        p32 = prepare_prenorm_xattn_params(gamma, beta, wq, wk, wv, wo, bo,
                                           heads=heads, use_bf16=False)
        out32 = jax.block_until_ready(prenorm_cross_attention(x_q, x_kv, p32))
        assert out32.shape == (B, Nq, dim)
        assert jnp.allclose(out32, ref, atol=f32_tol, rtol=f32_tol), "f32 mismatch"

        # Fast path: bf16 MXU operands + approx reciprocal.
        pbf = prepare_prenorm_xattn_params(gamma, beta, wq, wk, wv, wo, bo,
                                           heads=heads, use_bf16=True)
        outbf = jax.block_until_ready(prenorm_cross_attention(x_q, x_kv, pbf))
        assert jnp.allclose(outbf, ref, atol=bf16_tol, rtol=bf16_tol), "bf16 mismatch"

    key = jax.random.PRNGKey(0)
    k1, k2 = jax.random.split(key)

    # Toy module shapes (dim=32, inner=32): split-kv path + padded lane-dense out.
    run_case(k1, B=4, Nq=8, Nkv=16, dim=32, heads=4, dim_head=8,
             f32_tol=1e-4, bf16_tol=5e-2)
    # 128-aligned shapes: fused-kv path + unpadded lane-dense out.
    run_case(k2, B=2, Nq=8, Nkv=16, dim=128, heads=4, dim_head=32,
             f32_tol=2e-3, bf16_tol=7e-2)

    print("KERNEL_OK")
</pallas_src>

<mosaic_0001>
module attributes {stable_mosaic.version = 11 : i64} {
  func.func @_prenorm_xattn_kernel(%arg0: i32, %arg1: memref<32x32xf32, #tpu.memory_space<vmem>>, %arg2: memref<64x32xf32, #tpu.memory_space<vmem>>, %arg3: memref<1x32xf32, #tpu.memory_space<vmem>>, %arg4: memref<1x32xf32, #tpu.memory_space<vmem>>, %arg5: memref<32x32xf32, #tpu.memory_space<vmem>>, %arg6: memref<32x64xf32, #tpu.memory_space<vmem>>, %arg7: memref<32x128xf32, #tpu.memory_space<vmem>>, %arg8: memref<1x128xf32, #tpu.memory_space<vmem>>, %arg9: memref<32x128xf32, #tpu.memory_space<vmem>>) attributes {dimension_semantics = [#tpu.dimension_semantics<parallel>], iteration_bounds = array<i64: 1>, scalar_prefetch = 0 : i64, scratch_operands = 0 : i64, tpu.core_type = #tpu.core_type<tc>, window_params = [{transform_indices = @transform_0, window_bounds = array<i64: 32, 32>}, {transform_indices = @transform_1, window_bounds = array<i64: 64, 32>}, {pipeline_mode = #tpu.pipeline_mode<synchronous>, transform_indices = @transform_2, window_bounds = array<i64: 1, 32>}, {pipeline_mode = #tpu.pipeline_mode<synchronous>, transform_indices = @transform_3, window_bounds = array<i64: 1, 32>}, {pipeline_mode = #tpu.pipeline_mode<synchronous>, transform_indices = @transform_4, window_bounds = array<i64: 32, 32>}, {pipeline_mode = #tpu.pipeline_mode<synchronous>, transform_indices = @transform_5, window_bounds = array<i64: 32, 64>}, {pipeline_mode = #tpu.pipeline_mode<synchronous>, transform_indices = @transform_6, window_bounds = array<i64: 32, 128>}, {pipeline_mode = #tpu.pipeline_mode<synchronous>, transform_indices = @transform_7, window_bounds = array<i64: 1, 128>}, {transform_indices = @transform_8, window_bounds = array<i64: 32, 128>}]} {
    %c0 = arith.constant 0 : index
    %c0_0 = arith.constant 0 : index
    %0 = vector.load %arg1[%c0, %c0_0] : memref<32x32xf32, #tpu.memory_space<vmem>>, vector<32x32xf32>
    %cst = arith.constant dense<0.000000e+00> : vector<32xf32>
    %1 = vector.multi_reduction <add>, %0, %cst [1] : vector<32x32xf32> to vector<32xf32>
    %2 = vector.shape_cast %1 : vector<32xf32> to vector<32x1xf32>
    %cst_1 = arith.constant 3.200000e+01 : f32
    %3 = vector.broadcast %cst_1 : f32 to vector<32x1xf32>
    %4 = arith.divf %2, %3 : vector<32x1xf32>
    %5 = vector.broadcast %4 : vector<32x1xf32> to vector<32x32xf32>
    %6 = arith.subf %0, %5 : vector<32x32xf32>
    %7 = arith.mulf %6, %6 : vector<32x32xf32>
    %cst_2 = arith.constant dense<0.000000e+00> : vector<32xf32>
    %8 = vector.multi_reduction <add>, %7, %cst_2 [1] : vector<32x32xf32> to vector<32xf32>
    %9 = vector.shape_cast %8 : vector<32xf32> to vector<32x1xf32>
    %cst_3 = arith.constant 3.200000e+01 : f32
    %10 = vector.broadcast %cst_3 : f32 to vector<32x1xf32>
    %11 = arith.divf %9, %10 : vector<32x1xf32>
    %cst_4 = arith.constant 9.99999974E-6 : f32
    %12 = vector.broadcast %cst_4 : f32 to vector<32x1xf32>
    %13 = arith.addf %11, %12 : vector<32x1xf32>
    %14 = math.rsqrt %13 : vector<32x1xf32>
    %15 = vector.broadcast %14 : vector<32x1xf32> to vector<32x32xf32>
    %16 = arith.mulf %6, %15 : vector<32x32xf32>
    %c0_5 = arith.constant 0 : index
    %c0_6 = arith.constant 0 : index
    %17 = vector.load %arg3[%c0_5, %c0_6] : memref<1x32xf32, #tpu.memory_space<vmem>>, vector<1x32xf32>
    %18 = vector.broadcast %17 : vector<1x32xf32> to vector<32x32xf32>
    %19 = arith.mulf %16, %18 : vector<32x32xf32>
    %c0_7 = arith.constant 0 : index
    %c0_8 = arith.constant 0 : index
    %20 = vector.load %arg4[%c0_7, %c0_8] : memref<1x32xf32, #tpu.memory_space<vmem>>, vector<1x32xf32>
    %21 = vector.broadcast %20 : vector<1x32xf32> to vector<32x32xf32>
    %22 = arith.addf %19, %21 : vector<32x32xf32>
    %c0_9 = arith.constant 0 : index
    %c0_10 = arith.constant 0 : index
    %23 = vector.load %arg2[%c0_9, %c0_10] : memref<64x32xf32, #tpu.memory_space<vmem>>, vector<64x32xf32>
    %c0_11 = arith.constant 0 : index
    %c0_12 = arith.constant 0 : index
    %24 = vector.load %arg5[%c0_11, %c0_12] : memref<32x32xf32, #tpu.memory_space<vmem>>, vector<32x32xf32>
    %cst_13 = arith.constant dense<0.000000e+00> : vector<32x32xf32>
    %25 = tpu.matmul %22, %24, %cst_13 {dimension_numbers = #tpu.dot_dimension_numbers<[1], [0], [0], [1], [0, 0, 1, 1], [], []>} : vector<32x32xf32>, vector<32x32xf32>, vector<32x32xf32> -> vector<32x32xf32>
    %c0_14 = arith.constant 0 : index
    %c0_15 = arith.constant 0 : index
    %26 = vector.load %arg6[%c0_14, %c0_15] : memref<32x64xf32, #tpu.memory_space<vmem>>, vector<32x64xf32>
    %27 = vector.extract_strided_slice %26 {offsets = [0, 0], sizes = [32, 32], strides = [1, 1]} : vector<32x64xf32> to vector<32x32xf32>
    %cst_16 = arith.constant dense<0.000000e+00> : vector<64x32xf32>
    %28 = tpu.matmul %23, %27, %cst_16 {dimension_numbers = #tpu.dot_dimension_numbers<[1], [0], [0], [1], [0, 0, 1, 1], [], []>} : vector<64x32xf32>, vector<32x32xf32>, vector<64x32xf32> -> vector<64x32xf32>
    %29 = vector.extract_strided_slice %26 {offsets = [0, 32], sizes = [32, 32], strides = [1, 1]} : vector<32x64xf32> to vector<32x32xf32>
    %cst_17 = arith.constant dense<0.000000e+00> : vector<64x32xf32>
    %30 = tpu.matmul %23, %29, %cst_17 {dimension_numbers = #tpu.dot_dimension_numbers<[1], [0], [0], [1], [0, 0, 1, 1], [], []>} : vector<64x32xf32>, vector<32x32xf32>, vector<64x32xf32> -> vector<64x32xf32>
    %31 = vector.extract_strided_slice %25 {offsets = [0, 0], sizes = [8, 32], strides = [1, 1]} : vector<32x32xf32> to vector<8x32xf32>
    %32 = vector.extract_strided_slice %28 {offsets = [0, 0], sizes = [16, 32], strides = [1, 1]} : vector<64x32xf32> to vector<16x32xf32>
    %33 = vector.extract_strided_slice %30 {offsets = [0, 0], sizes = [16, 32], strides = [1, 1]} : vector<64x32xf32> to vector<16x32xf32>
    %34 = vector.extract_strided_slice %31 {offsets = [0, 0], sizes = [8, 8], strides = [1, 1]} : vector<8x32xf32> to vector<8x8xf32>
    %35 = vector.extract_strided_slice %32 {offsets = [0, 0], sizes = [16, 8], strides = [1, 1]} : vector<16x32xf32> to vector<16x8xf32>
    %36 = vector.extract_strided_slice %33 {offsets = [0, 0], sizes = [16, 8], strides = [1, 1]} : vector<16x32xf32> to vector<16x8xf32>
    %cst_18 = arith.constant dense<0.000000e+00> : vector<8x16xf32>
    %37 = tpu.matmul %34, %35, %cst_18 {dimension_numbers = #tpu.dot_dimension_numbers<[1], [1], [0], [0], [0, 0, 1, 0], [], []>} : vector<8x8xf32>, vector<16x8xf32>, vector<8x16xf32> -> vector<8x16xf32>
    %cst_19 = arith.constant dense<0xFF800000> : vector<8xf32>
    %38 = vector.multi_reduction <maximumf>, %37, %cst_19 [1] : vector<8x16xf32> to vector<8xf32>
    %39 = vector.shape_cast %38 : vector<8xf32> to vector<8x1xf32>
    %40 = vector.broadcast %39 : vector<8x1xf32> to vector<8x16xf32>
    %41 = arith.subf %37, %40 : vector<8x16xf32>
    %42 = math.exp %41 : vector<8x16xf32>
    %cst_20 = arith.constant dense<0.000000e+00> : vector<8xf32>
    %43 = vector.multi_reduction <add>, %42, %cst_20 [1] : vector<8x16xf32> to vector<8xf32>
    %44 = vector.shape_cast %43 : vector<8xf32> to vector<8x1xf32>
    %45 = tpu.reciprocal %44 : vector<8x1xf32> -> vector<8x1xf32>
    %46 = vector.broadcast %45 : vector<8x1xf32> to vector<8x16xf32>
    %47 = arith.mulf %42, %46 : vector<8x16xf32>
    %cst_21 = arith.constant dense<0.000000e+00> : vector<8x8xf32>
    %48 = tpu.matmul %47, %36, %cst_21 {dimension_numbers = #tpu.dot_dimension_numbers<[1], [0], [0], [1], [0, 0, 1, 1], [], []>} : vector<8x16xf32>, vector<16x8xf32>, vector<8x8xf32> -> vector<8x8xf32>
    %49 = vector.extract_strided_slice %31 {offsets = [0, 8], sizes = [8, 8], strides = [1, 1]} : vector<8x32xf32> to vector<8x8xf32>
    %50 = vector.extract_strided_slice %32 {offsets = [0, 8], sizes = [16, 8], strides = [1, 1]} : vector<16x32xf32> to vector<16x8xf32>
    %51 = vector.extract_strided_slice %33 {offsets = [0, 8], sizes = [16, 8], strides = [1, 1]} : vector<16x32xf32> to vector<16x8xf32>
    %cst_22 = arith.constant dense<0.000000e+00> : vector<8x16xf32>
    %52 = tpu.matmul %49, %50, %cst_22 {dimension_numbers = #tpu.dot_dimension_numbers<[1], [1], [0], [0], [0, 0, 1, 0], [], []>} : vector<8x8xf32>, vector<16x8xf32>, vector<8x16xf32> -> vector<8x16xf32>
    %cst_23 = arith.constant dense<0xFF800000> : vector<8xf32>
    %53 = vector.multi_reduction <maximumf>, %52, %cst_23 [1] : vector<8x16xf32> to vector<8xf32>
    %54 = vector.shape_cast %53 : vector<8xf32> to vector<8x1xf32>
    %55 = vector.broadcast %54 : vector<8x1xf32> to vector<8x16xf32>
    %56 = arith.subf %52, %55 : vector<8x16xf32>
    %57 = math.exp %56 : vector<8x16xf32>
    %cst_24 = arith.constant dense<0.000000e+00> : vector<8xf32>
    %58 = vector.multi_reduction <add>, %57, %cst_24 [1] : vector<8x16xf32> to vector<8xf32>
    %59 = vector.shape_cast %58 : vector<8xf32> to vector<8x1xf32>
    %60 = tpu.reciprocal %59 : vector<8x1xf32> -> vector<8x1xf32>
    %61 = vector.broadcast %60 : vector<8x1xf32> to vector<8x16xf32>
    %62 = arith.mulf %57, %61 : vector<8x16xf32>
    %cst_25 = arith.constant dense<0.000000e+00> : vector<8x8xf32>
    %63 = tpu.matmul %62, %51, %cst_25 {dimension_numbers = #tpu.dot_dimension_numbers<[1], [0], [0], [1], [0, 0, 1, 1], [], []>} : vector<8x16xf32>, vector<16x8xf32>, vector<8x8xf32> -> vector<8x8xf32>
    %64 = vector.extract_strided_slice %31 {offsets = [0, 16], sizes = [8, 8], strides = [1, 1]} : vector<8x32xf32> to vector<8x8xf32>
    %65 = vector.extract_strided_slice %32 {offsets = [0, 16], sizes = [16, 8], strides = [1, 1]} : vector<16x32xf32> to vector<16x8xf32>
    %66 = vector.extract_strided_slice %33 {offsets = [0, 16], sizes = [16, 8], strides = [1, 1]} : vector<16x32xf32> to vector<16x8xf32>
    %cst_26 = arith.constant dense<0.000000e+00> : vector<8x16xf32>
    %67 = tpu.matmul %64, %65, %cst_26 {dimension_numbers = #tpu.dot_dimension_numbers<[1], [1], [0], [0], [0, 0, 1, 0], [], []>} : vector<8x8xf32>, vector<16x8xf32>, vector<8x16xf32> -> vector<8x16xf32>
    %cst_27 = arith.constant dense<0xFF800000> : vector<8xf32>
    %68 = vector.multi_reduction <maximumf>, %67, %cst_27 [1] : vector<8x16xf32> to vector<8xf32>
    %69 = vector.shape_cast %68 : vector<8xf32> to vector<8x1xf32>
    %70 = vector.broadcast %69 : vector<8x1xf32> to vector<8x16xf32>
    %71 = arith.subf %67, %70 : vector<8x16xf32>
    %72 = math.exp %71 : vector<8x16xf32>
    %cst_28 = arith.constant dense<0.000000e+00> : vector<8xf32>
    %73 = vector.multi_reduction <add>, %72, %cst_28 [1] : vector<8x16xf32> to vector<8xf32>
    %74 = vector.shape_cast %73 : vector<8xf32> to vector<8x1xf32>
    %75 = tpu.reciprocal %74 : vector<8x1xf32> -> vector<8x1xf32>
    %76 = vector.broadcast %75 : vector<8x1xf32> to vector<8x16xf32>
    %77 = arith.mulf %72, %76 : vector<8x16xf32>
    %cst_29 = arith.constant dense<0.000000e+00> : vector<8x8xf32>
    %78 = tpu.matmul %77, %66, %cst_29 {dimension_numbers = #tpu.dot_dimension_numbers<[1], [0], [0], [1], [0, 0, 1, 1], [], []>} : vector<8x16xf32>, vector<16x8xf32>, vector<8x8xf32> -> vector<8x8xf32>
    %79 = vector.extract_strided_slice %31 {offsets = [0, 24], sizes = [8, 8], strides = [1, 1]} : vector<8x32xf32> to vector<8x8xf32>
    %80 = vector.extract_strided_slice %32 {offsets = [0, 24], sizes = [16, 8], strides = [1, 1]} : vector<16x32xf32> to vector<16x8xf32>
    %81 = vector.extract_strided_slice %33 {offsets = [0, 24], sizes = [16, 8], strides = [1, 1]} : vector<16x32xf32> to vector<16x8xf32>
    %cst_30 = arith.constant dense<0.000000e+00> : vector<8x16xf32>
    %82 = tpu.matmul %79, %80, %cst_30 {dimension_numbers = #tpu.dot_dimension_numbers<[1], [1], [0], [0], [0, 0, 1, 0], [], []>} : vector<8x8xf32>, vector<16x8xf32>, vector<8x16xf32> -> vector<8x16xf32>
    %cst_31 = arith.constant dense<0xFF800000> : vector<8xf32>
    %83 = vector.multi_reduction <maximumf>, %82, %cst_31 [1] : vector<8x16xf32> to vector<8xf32>
    %84 = vector.shape_cast %83 : vector<8xf32> to vector<8x1xf32>
    %85 = vector.broadcast %84 : vector<8x1xf32> to vector<8x16xf32>
    %86 = arith.subf %82, %85 : vector<8x16xf32>
    %87 = math.exp %86 : vector<8x16xf32>
    %cst_32 = arith.constant dense<0.000000e+00> : vector<8xf32>
    %88 = vector.multi_reduction <add>, %87, %cst_32 [1] : vector<8x16xf32> to vector<8xf32>
    %89 = vector.shape_cast %88 : vector<8xf32> to vector<8x1xf32>
    %90 = tpu.reciprocal %89 : vector<8x1xf32> -> vector<8x1xf32>
    %91 = vector.broadcast %90 : vector<8x1xf32> to vector<8x16xf32>
    %92 = arith.mulf %87, %91 : vector<8x16xf32>
    %cst_33 = arith.constant dense<0.000000e+00> : vector<8x8xf32>
    %93 = tpu.matmul %92, %81, %cst_33 {dimension_numbers = #tpu.dot_dimension_numbers<[1], [0], [0], [1], [0, 0, 1, 1], [], []>} : vector<8x16xf32>, vector<16x8xf32>, vector<8x8xf32> -> vector<8x8xf32>
    %94 = tpu.concatenate %48, %63, %78, %93 in 1 : vector<8x8xf32>, vector<8x8xf32>, vector<8x8xf32>, vector<8x8xf32> -> vector<8x32xf32>
    %95 = vector.extract_strided_slice %25 {offsets = [8, 0], sizes = [8, 32], strides = [1, 1]} : vector<32x32xf32> to vector<8x32xf32>
    %96 = vector.extract_strided_slice %28 {offsets = [16, 0], sizes = [16, 32], strides = [1, 1]} : vector<64x32xf32> to vector<16x32xf32>
    %97 = vector.extract_strided_slice %30 {offsets = [16, 0], sizes = [16, 32], strides = [1, 1]} : vector<64x32xf32> to vector<16x32xf32>
    %98 = vector.extract_strided_slice %95 {offsets = [0, 0], sizes = [8, 8], strides = [1, 1]} : vector<8x32xf32> to vector<8x8xf32>
    %99 = vector.extract_strided_slice %96 {offsets = [0, 0], sizes = [16, 8], strides = [1, 1]} : vector<16x32xf32> to vector<16x8xf32>
    %100 = vector.extract_strided_slice %97 {offsets = [0, 0], sizes = [16, 8], strides = [1, 1]} : vector<16x32xf32> to vector<16x8xf32>
    %cst_34 = arith.constant dense<0.000000e+00> : vector<8x16xf32>
    %101 = tpu.matmul %98, %99, %cst_34 {dimension_numbers = #tpu.dot_dimension_numbers<[1], [1], [0], [0], [0, 0, 1, 0], [], []>} : vector<8x8xf32>, vector<16x8xf32>, vector<8x16xf32> -> vector<8x16xf32>
    %cst_35 = arith.constant dense<0xFF800000> : vector<8xf32>
    %102 = vector.multi_reduction <maximumf>, %101, %cst_35 [1] : vector<8x16xf32> to vector<8xf32>
    %103 = vector.shape_cast %102 : vector<8xf32> to vector<8x1xf32>
    %104 = vector.broadcast %103 : vector<8x1xf32> to vector<8x16xf32>
    %105 = arith.subf %101, %104 : vector<8x16xf32>
    %106 = math.exp %105 : vector<8x16xf32>
    %cst_36 = arith.constant dense<0.000000e+00> : vector<8xf32>
    %107 = vector.multi_reduction <add>, %106, %cst_36 [1] : vector<8x16xf32> to vector<8xf32>
    %108 = vector.shape_cast %107 : vector<8xf32> to vector<8x1xf32>
    %109 = tpu.reciprocal %108 : vector<8x1xf32> -> vector<8x1xf32>
    %110 = vector.broadcast %109 : vector<8x1xf32> to vector<8x16xf32>
    %111 = arith.mulf %106, %110 : vector<8x16xf32>
    %cst_37 = arith.constant dense<0.000000e+00> : vector<8x8xf32>
    %112 = tpu.matmul %111, %100, %cst_37 {dimension_numbers = #tpu.dot_dimension_numbers<[1], [0], [0], [1], [0, 0, 1, 1], [], []>} : vector<8x16xf32>, vector<16x8xf32>, vector<8x8xf32> -> vector<8x8xf32>
    %113 = vector.extract_strided_slice %95 {offsets = [0, 8], sizes = [8, 8], strides = [1, 1]} : vector<8x32xf32> to vector<8x8xf32>
    %114 = vector.extract_strided_slice %96 {offsets = [0, 8], sizes = [16, 8], strides = [1, 1]} : vector<16x32xf32> to vector<16x8xf32>
    %115 = vector.extract_strided_slice %97 {offsets = [0, 8], sizes = [16, 8], strides = [1, 1]} : vector<16x32xf32> to vector<16x8xf32>
    %cst_38 = arith.constant dense<0.000000e+00> : vector<8x16xf32>
    %116 = tpu.matmul %113, %114, %cst_38 {dimension_numbers = #tpu.dot_dimension_numbers<[1], [1], [0], [0], [0, 0, 1, 0], [], []>} : vector<8x8xf32>, vector<16x8xf32>, vector<8x16xf32> -> vector<8x16xf32>
    %cst_39 = arith.constant dense<0xFF800000> : vector<8xf32>
    %117 = vector.multi_reduction <maximumf>, %116, %cst_39 [1] : vector<8x16xf32> to vector<8xf32>
    %118 = vector.shape_cast %117 : vector<8xf32> to vector<8x1xf32>
    %119 = vector.broadcast %118 : vector<8x1xf32> to vector<8x16xf32>
    %120 = arith.subf %116, %119 : vector<8x16xf32>
    %121 = math.exp %120 : vector<8x16xf32>
    %cst_40 = arith.constant dense<0.000000e+00> : vector<8xf32>
    %122 = vector.multi_reduction <add>, %121, %cst_40 [1] : vector<8x16xf32> to vector<8xf32>
    %123 = vector.shape_cast %122 : vector<8xf32> to vector<8x1xf32>
    %124 = tpu.reciprocal %123 : vector<8x1xf32> -> vector<8x1xf32>
    %125 = vector.broadcast %124 : vector<8x1xf32> to vector<8x16xf32>
    %126 = arith.mulf %121, %125 : vector<8x16xf32>
    %cst_41 = arith.constant dense<0.000000e+00> : vector<8x8xf32>
    %127 = tpu.matmul %126, %115, %cst_41 {dimension_numbers = #tpu.dot_dimension_numbers<[1], [0], [0], [1], [0, 0, 1, 1], [], []>} : vector<8x16xf32>, vector<16x8xf32>, vector<8x8xf32> -> vector<8x8xf32>
    %128 = vector.extract_strided_slice %95 {offsets = [0, 16], sizes = [8, 8], strides = [1, 1]} : vector<8x32xf32> to vector<8x8xf32>
    %129 = vector.extract_strided_slice %96 {offsets = [0, 16], sizes = [16, 8], strides = [1, 1]} : vector<16x32xf32> to vector<16x8xf32>
    %130 = vector.extract_strided_slice %97 {offsets = [0, 16], sizes = [16, 8], strides = [1, 1]} : vector<16x32xf32> to vector<16x8xf32>
    %cst_42 = arith.constant dense<0.000000e+00> : vector<8x16xf32>
    %131 = tpu.matmul %128, %129, %cst_42 {dimension_numbers = #tpu.dot_dimension_numbers<[1], [1], [0], [0], [0, 0, 1, 0], [], []>} : vector<8x8xf32>, vector<16x8xf32>, vector<8x16xf32> -> vector<8x16xf32>
    %cst_43 = arith.constant dense<0xFF800000> : vector<8xf32>
    %132 = vector.multi_reduction <maximumf>, %131, %cst_43 [1] : vector<8x16xf32> to vector<8xf32>
    %133 = vector.shape_cast %132 : vector<8xf32> to vector<8x1xf32>
    %134 = vector.broadcast %133 : vector<8x1xf32> to vector<8x16xf32>
    %135 = arith.subf %131, %134 : vector<8x16xf32>
    %136 = math.exp %135 : vector<8x16xf32>
    %cst_44 = arith.constant dense<0.000000e+00> : vector<8xf32>
    %137 = vector.multi_reduction <add>, %136, %cst_44 [1] : vector<8x16xf32> to vector<8xf32>
    %138 = vector.shape_cast %137 : vector<8xf32> to vector<8x1xf32>
    %139 = tpu.reciprocal %138 : vector<8x1xf32> -> vector<8x1xf32>
    %140 = vector.broadcast %139 : vector<8x1xf32> to vector<8x16xf32>
    %141 = arith.mulf %136, %140 : vector<8x16xf32>
    %cst_45 = arith.constant dense<0.000000e+00> : vector<8x8xf32>
    %142 = tpu.matmul %141, %130, %cst_45 {dimension_numbers = #tpu.dot_dimension_numbers<[1], [0], [0], [1], [0, 0, 1, 1], [], []>} : vector<8x16xf32>, vector<16x8xf32>, vector<8x8xf32> -> vector<8x8xf32>
    %143 = vector.extract_strided_slice %95 {offsets = [0, 24], sizes = [8, 8], strides = [1, 1]} : vector<8x32xf32> to vector<8x8xf32>
    %144 = vector.extract_strided_slice %96 {offsets = [0, 24], sizes = [16, 8], strides = [1, 1]} : vector<16x32xf32> to vector<16x8xf32>
    %145 = vector.extract_strided_slice %97 {offsets = [0, 24], sizes = [16, 8], strides = [1, 1]} : vector<16x32xf32> to vector<16x8xf32>
    %cst_46 = arith.constant dense<0.000000e+00> : vector<8x16xf32>
    %146 = tpu.matmul %143, %144, %cst_46 {dimension_numbers = #tpu.dot_dimension_numbers<[1], [1], [0], [0], [0, 0, 1, 0], [], []>} : vector<8x8xf32>, vector<16x8xf32>, vector<8x16xf32> -> vector<8x16xf32>
    %cst_47 = arith.constant dense<0xFF800000> : vector<8xf32>
    %147 = vector.multi_reduction <maximumf>, %146, %cst_47 [1] : vector<8x16xf32> to vector<8xf32>
    %148 = vector.shape_cast %147 : vector<8xf32> to vector<8x1xf32>
    %149 = vector.broadcast %148 : vector<8x1xf32> to vector<8x16xf32>
    %150 = arith.subf %146, %149 : vector<8x16xf32>
    %151 = math.exp %150 : vector<8x16xf32>
    %cst_48 = arith.constant dense<0.000000e+00> : vector<8xf32>
    %152 = vector.multi_reduction <add>, %151, %cst_48 [1] : vector<8x16xf32> to vector<8xf32>
    %153 = vector.shape_cast %152 : vector<8xf32> to vector<8x1xf32>
    %154 = tpu.reciprocal %153 : vector<8x1xf32> -> vector<8x1xf32>
    %155 = vector.broadcast %154 : vector<8x1xf32> to vector<8x16xf32>
    %156 = arith.mulf %151, %155 : vector<8x16xf32>
    %cst_49 = arith.constant dense<0.000000e+00> : vector<8x8xf32>
    %157 = tpu.matmul %156, %145, %cst_49 {dimension_numbers = #tpu.dot_dimension_numbers<[1], [0], [0], [1], [0, 0, 1, 1], [], []>} : vector<8x16xf32>, vector<16x8xf32>, vector<8x8xf32> -> vector<8x8xf32>
    %158 = tpu.concatenate %112, %127, %142, %157 in 1 : vector<8x8xf32>, vector<8x8xf32>, vector<8x8xf32>, vector<8x8xf32> -> vector<8x32xf32>
    %159 = vector.extract_strided_slice %25 {offsets = [16, 0], sizes = [8, 32], strides = [1, 1]} : vector<32x32xf32> to vector<8x32xf32>
    %160 = vector.extract_strided_slice %28 {offsets = [32, 0], sizes = [16, 32], strides = [1, 1]} : vector<64x32xf32> to vector<16x32xf32>
    %161 = vector.extract_strided_slice %30 {offsets = [32, 0], sizes = [16, 32], strides = [1, 1]} : vector<64x32xf32> to vector<16x32xf32>
    %162 = vector.extract_strided_slice %159 {offsets = [0, 0], sizes = [8, 8], strides = [1, 1]} : vector<8x32xf32> to vector<8x8xf32>
    %163 = vector.extract_strided_slice %160 {offsets = [0, 0], sizes = [16, 8], strides = [1, 1]} : vector<16x32xf32> to vector<16x8xf32>
    %164 = vector.extract_strided_slice %161 {offsets = [0, 0], sizes = [16, 8], strides = [1, 1]} : vector<16x32xf32> to vector<16x8xf32>
    %cst_50 = arith.constant dense<0.000000e+00> : vector<8x16xf32>
    %165 = tpu.matmul %162, %163, %cst_50 {dimension_numbers = #tpu.dot_dimension_numbers<[1], [1], [0], [0], [0, 0, 1, 0], [], []>} : vector<8x8xf32>, vector<16x8xf32>, vector<8x16xf32> -> vector<8x16xf32>
    %cst_51 = arith.constant dense<0xFF800000> : vector<8xf32>
    %166 = vector.multi_reduction <maximumf>, %165, %cst_51 [1] : vector<8x16xf32> to vector<8xf32>
    %167 = vector.shape_cast %166 : vector<8xf32> to vector<8x1xf32>
    %168 = vector.broadcast %167 : vector<8x1xf32> to vector<8x16xf32>
    %169 = arith.subf %165, %168 : vector<8x16xf32>
    %170 = math.exp %169 : vector<8x16xf32>
    %cst_52 = arith.constant dense<0.000000e+00> : vector<8xf32>
    %171 = vector.multi_reduction <add>, %170, %cst_52 [1] : vector<8x16xf32> to vector<8xf32>
    %172 = vector.shape_cast %171 : vector<8xf32> to vector<8x1xf32>
    %173 = tpu.reciprocal %172 : vector<8x1xf32> -> vector<8x1xf32>
    %174 = vector.broadcast %173 : vector<8x1xf32> to vector<8x16xf32>
    %175 = arith.mulf %170, %174 : vector<8x16xf32>
    %cst_53 = arith.constant dense<0.000000e+00> : vector<8x8xf32>
    %176 = tpu.matmul %175, %164, %cst_53 {dimension_numbers = #tpu.dot_dimension_numbers<[1], [0], [0], [1], [0, 0, 1, 1], [], []>} : vector<8x16xf32>, vector<16x8xf32>, vector<8x8xf32> -> vector<8x8xf32>
    %177 = vector.extract_strided_slice %159 {offsets = [0, 8], sizes = [8, 8], strides = [1, 1]} : vector<8x32xf32> to vector<8x8xf32>
    %178 = vector.extract_strided_slice %160 {offsets = [0, 8], sizes = [16, 8], strides = [1, 1]} : vector<16x32xf32> to vector<16x8xf32>
    %179 = vector.extract_strided_slice %161 {offsets = [0, 8], sizes = [16, 8], strides = [1, 1]} : vector<16x32xf32> to vector<16x8xf32>
    %cst_54 = arith.constant dense<0.000000e+00> : vector<8x16xf32>
    %180 = tpu.matmul %177, %178, %cst_54 {dimension_numbers = #tpu.dot_dimension_numbers<[1], [1], [0], [0], [0, 0, 1, 0], [], []>} : vector<8x8xf32>, vector<16x8xf32>, vector<8x16xf32> -> vector<8x16xf32>
    %cst_55 = arith.constant dense<0xFF800000> : vector<8xf32>
    %181 = vector.multi_reduction <maximumf>, %180, %cst_55 [1] : vector<8x16xf32> to vector<8xf32>
    %182 = vector.shape_cast %181 : vector<8xf32> to vector<8x1xf32>
    %183 = vector.broadcast %182 : vector<8x1xf32> to vector<8x16xf32>
    %184 = arith.subf %180, %183 : vector<8x16xf32>
    %185 = math.exp %184 : vector<8x16xf32>
    %cst_56 = arith.constant dense<0.000000e+00> : vector<8xf32>
    %186 = vector.multi_reduction <add>, %185, %cst_56 [1] : vector<8x16xf32> to vector<8xf32>
    %187 = vector.shape_cast %186 : vector<8xf32> to vector<8x1xf32>
    %188 = tpu.reciprocal %187 : vector<8x1xf32> -> vector<8x1xf32>
    %189 = vector.broadcast %188 : vector<8x1xf32> to vector<8x16xf32>
    %190 = arith.mulf %185, %189 : vector<8x16xf32>
    %cst_57 = arith.constant dense<0.000000e+00> : vector<8x8xf32>
    %191 = tpu.matmul %190, %179, %cst_57 {dimension_numbers = #tpu.dot_dimension_numbers<[1], [0], [0], [1], [0, 0, 1, 1], [], []>} : vector<8x16xf32>, vector<16x8xf32>, vector<8x8xf32> -> vector<8x8xf32>
    %192 = vector.extract_strided_slice %159 {offsets = [0, 16], sizes = [8, 8], strides = [1, 1]} : vector<8x32xf32> to vector<8x8xf32>
    %193 = vector.extract_strided_slice %160 {offsets = [0, 16], sizes = [16, 8], strides = [1, 1]} : vector<16x32xf32> to vector<16x8xf32>
    %194 = vector.extract_strided_slice %161 {offsets = [0, 16], sizes = [16, 8], strides = [1, 1]} : vector<16x32xf32> to vector<16x8xf32>
    %cst_58 = arith.constant dense<0.000000e+00> : vector<8x16xf32>
    %195 = tpu.matmul %192, %193, %cst_58 {dimension_numbers = #tpu.dot_dimension_numbers<[1], [1], [0], [0], [0, 0, 1, 0], [], []>} : vector<8x8xf32>, vector<16x8xf32>, vector<8x16xf32> -> vector<8x16xf32>
    %cst_59 = arith.constant dense<0xFF800000> : vector<8xf32>
    %196 = vector.multi_reduction <maximumf>, %195, %cst_59 [1] : vector<8x16xf32> to vector<8xf32>
    %197 = vector.shape_cast %196 : vector<8xf32> to vector<8x1xf32>
    %198 = vector.broadcast %197 : vector<8x1xf32> to vector<8x16xf32>
    %199 = arith.subf %195, %198 : vector<8x16xf32>
    %200 = math.exp %199 : vector<8x16xf32>
    %cst_60 = arith.constant dense<0.000000e+00> : vector<8xf32>
    %201 = vector.multi_reduction <add>, %200, %cst_60 [1] : vector<8x16xf32> to vector<8xf32>
    %202 = vector.shape_cast %201 : vector<8xf32> to vector<8x1xf32>
    %203 = tpu.reciprocal %202 : vector<8x1xf32> -> vector<8x1xf32>
    %204 = vector.broadcast %203 : vector<8x1xf32> to vector<8x16xf32>
    %205 = arith.mulf %200, %204 : vector<8x16xf32>
    %cst_61 = arith.constant dense<0.000000e+00> : vector<8x8xf32>
    %206 = tpu.matmul %205, %194, %cst_61 {dimension_numbers = #tpu.dot_dimension_numbers<[1], [0], [0], [1], [0, 0, 1, 1], [], []>} : vector<8x16xf32>, vector<16x8xf32>, vector<8x8xf32> -> vector<8x8xf32>
    %207 = vector.extract_strided_slice %159 {offsets = [0, 24], sizes = [8, 8], strides = [1, 1]} : vector<8x32xf32> to vector<8x8xf32>
    %208 = vector.extract_strided_slice %160 {offsets = [0, 24], sizes = [16, 8], strides = [1, 1]} : vector<16x32xf32> to vector<16x8xf32>
    %209 = vector.extract_strided_slice %161 {offsets = [0, 24], sizes = [16, 8], strides = [1, 1]} : vector<16x32xf32> to vector<16x8xf32>
    %cst_62 = arith.constant dense<0.000000e+00> : vector<8x16xf32>
    %210 = tpu.matmul %207, %208, %cst_62 {dimension_numbers = #tpu.dot_dimension_numbers<[1], [1], [0], [0], [0, 0, 1, 0], [], []>} : vector<8x8xf32>, vector<16x8xf32>, vector<8x16xf32> -> vector<8x16xf32>
    %cst_63 = arith.constant dense<0xFF800000> : vector<8xf32>
    %211 = vector.multi_reduction <maximumf>, %210, %cst_63 [1] : vector<8x16xf32> to vector<8xf32>
    %212 = vector.shape_cast %211 : vector<8xf32> to vector<8x1xf32>
    %213 = vector.broadcast %212 : vector<8x1xf32> to vector<8x16xf32>
    %214 = arith.subf %210, %213 : vector<8x16xf32>
    %215 = math.exp %214 : vector<8x16xf32>
    %cst_64 = arith.constant dense<0.000000e+00> : vector<8xf32>
    %216 = vector.multi_reduction <add>, %215, %cst_64 [1] : vector<8x16xf32> to vector<8xf32>
    %217 = vector.shape_cast %216 : vector<8xf32> to vector<8x1xf32>
    %218 = tpu.reciprocal %217 : vector<8x1xf32> -> vector<8x1xf32>
    %219 = vector.broadcast %218 : vector<8x1xf32> to vector<8x16xf32>
    %220 = arith.mulf %215, %219 : vector<8x16xf32>
    %cst_65 = arith.constant dense<0.000000e+00> : vector<8x8xf32>
    %221 = tpu.matmul %220, %209, %cst_65 {dimension_numbers = #tpu.dot_dimension_numbers<[1], [0], [0], [1], [0, 0, 1, 1], [], []>} : vector<8x16xf32>, vector<16x8xf32>, vector<8x8xf32> -> vector<8x8xf32>
    %222 = tpu.concatenate %176, %191, %206, %221 in 1 : vector<8x8xf32>, vector<8x8xf32>, vector<8x8xf32>, vector<8x8xf32> -> vector<8x32xf32>
    %223 = vector.extract_strided_slice %25 {offsets = [24, 0], sizes = [8, 32], strides = [1, 1]} : vector<32x32xf32> to vector<8x32xf32>
    %224 = vector.extract_strided_slice %28 {offsets = [48, 0], sizes = [16, 32], strides = [1, 1]} : vector<64x32xf32> to vector<16x32xf32>
    %225 = vector.extract_strided_slice %30 {offsets = [48, 0], sizes = [16, 32], strides = [1, 1]} : vector<64x32xf32> to vector<16x32xf32>
    %226 = vector.extract_strided_slice %223 {offsets = [0, 0], sizes = [8, 8], strides = [1, 1]} : vector<8x32xf32> to vector<8x8xf32>
    %227 = vector.extract_strided_slice %224 {offsets = [0, 0], sizes = [16, 8], strides = [1, 1]} : vector<16x32xf32> to vector<16x8xf32>
    %228 = vector.extract_strided_slice %225 {offsets = [0, 0], sizes = [16, 8], strides = [1, 1]} : vector<16x32xf32> to vector<16x8xf32>
    %cst_66 = arith.constant dense<0.000000e+00> : vector<8x16xf32>
    %229 = tpu.matmul %226, %227, %cst_66 {dimension_numbers = #tpu.dot_dimension_numbers<[1], [1], [0], [0], [0, 0, 1, 0], [], []>} : vector<8x8xf32>, vector<16x8xf32>, vector<8x16xf32> -> vector<8x16xf32>
    %cst_67 = arith.constant dense<0xFF800000> : vector<8xf32>
    %230 = vector.multi_reduction <maximumf>, %229, %cst_67 [1] : vector<8x16xf32> to vector<8xf32>
    %231 = vector.shape_cast %230 : vector<8xf32> to vector<8x1xf32>
    %232 = vector.broadcast %231 : vector<8x1xf32> to vector<8x16xf32>
    %233 = arith.subf %229, %232 : vector<8x16xf32>
    %234 = math.exp %233 : vector<8x16xf32>
    %cst_68 = arith.constant dense<0.000000e+00> : vector<8xf32>
    %235 = vector.multi_reduction <add>, %234, %cst_68 [1] : vector<8x16xf32> to vector<8xf32>
    %236 = vector.shape_cast %235 : vector<8xf32> to vector<8x1xf32>
    %237 = tpu.reciprocal %236 : vector<8x1xf32> -> vector<8x1xf32>
    %238 = vector.broadcast %237 : vector<8x1xf32> to vector<8x16xf32>
    %239 = arith.mulf %234, %238 : vector<8x16xf32>
    %cst_69 = arith.constant dense<0.000000e+00> : vector<8x8xf32>
    %240 = tpu.matmul %239, %228, %cst_69 {dimension_numbers = #tpu.dot_dimension_numbers<[1], [0], [0], [1], [0, 0, 1, 1], [], []>} : vector<8x16xf32>, vector<16x8xf32>, vector<8x8xf32> -> vector<8x8xf32>
    %241 = vector.extract_strided_slice %223 {offsets = [0, 8], sizes = [8, 8], strides = [1, 1]} : vector<8x32xf32> to vector<8x8xf32>
    %242 = vector.extract_strided_slice %224 {offsets = [0, 8], sizes = [16, 8], strides = [1, 1]} : vector<16x32xf32> to vector<16x8xf32>
    %243 = vector.extract_strided_slice %225 {offsets = [0, 8], sizes = [16, 8], strides = [1, 1]} : vector<16x32xf32> to vector<16x8xf32>
    %cst_70 = arith.constant dense<0.000000e+00> : vector<8x16xf32>
    %244 = tpu.matmul %241, %242, %cst_70 {dimension_numbers = #tpu.dot_dimension_numbers<[1], [1], [0], [0], [0, 0, 1, 0], [], []>} : vector<8x8xf32>, vector<16x8xf32>, vector<8x16xf32> -> vector<8x16xf32>
    %cst_71 = arith.constant dense<0xFF800000> : vector<8xf32>
    %245 = vector.multi_reduction <maximumf>, %244, %cst_71 [1] : vector<8x16xf32> to vector<8xf32>
    %246 = vector.shape_cast %245 : vector<8xf32> to vector<8x1xf32>
    %247 = vector.broadcast %246 : vector<8x1xf32> to vector<8x16xf32>
    %248 = arith.subf %244, %247 : vector<8x16xf32>
    %249 = math.exp %248 : vector<8x16xf32>
    %cst_72 = arith.constant dense<0.000000e+00> : vector<8xf32>
    %250 = vector.multi_reduction <add>, %249, %cst_72 [1] : vector<8x16xf32> to vector<8xf32>
    %251 = vector.shape_cast %250 : vector<8xf32> to vector<8x1xf32>
    %252 = tpu.reciprocal %251 : vector<8x1xf32> -> vector<8x1xf32>
    %253 = vector.broadcast %252 : vector<8x1xf32> to vector<8x16xf32>
    %254 = arith.mulf %249, %253 : vector<8x16xf32>
    %cst_73 = arith.constant dense<0.000000e+00> : vector<8x8xf32>
    %255 = tpu.matmul %254, %243, %cst_73 {dimension_numbers = #tpu.dot_dimension_numbers<[1], [0], [0], [1], [0, 0, 1, 1], [], []>} : vector<8x16xf32>, vector<16x8xf32>, vector<8x8xf32> -> vector<8x8xf32>
    %256 = vector.extract_strided_slice %223 {offsets = [0, 16], sizes = [8, 8], strides = [1, 1]} : vector<8x32xf32> to vector<8x8xf32>
    %257 = vector.extract_strided_slice %224 {offsets = [0, 16], sizes = [16, 8], strides = [1, 1]} : vector<16x32xf32> to vector<16x8xf32>
    %258 = vector.extract_strided_slice %225 {offsets = [0, 16], sizes = [16, 8], strides = [1, 1]} : vector<16x32xf32> to vector<16x8xf32>
    %cst_74 = arith.constant dense<0.000000e+00> : vector<8x16xf32>
    %259 = tpu.matmul %256, %257, %cst_74 {dimension_numbers = #tpu.dot_dimension_numbers<[1], [1], [0], [0], [0, 0, 1, 0], [], []>} : vector<8x8xf32>, vector<16x8xf32>, vector<8x16xf32> -> vector<8x16xf32>
    %cst_75 = arith.constant dense<0xFF800000> : vector<8xf32>
    %260 = vector.multi_reduction <maximumf>, %259, %cst_75 [1] : vector<8x16xf32> to vector<8xf32>
    %261 = vector.shape_cast %260 : vector<8xf32> to vector<8x1xf32>
    %262 = vector.broadcast %261 : vector<8x1xf32> to vector<8x16xf32>
    %263 = arith.subf %259, %262 : vector<8x16xf32>
    %264 = math.exp %263 : vector<8x16xf32>
    %cst_76 = arith.constant dense<0.000000e+00> : vector<8xf32>
    %265 = vector.multi_reduction <add>, %264, %cst_76 [1] : vector<8x16xf32> to vector<8xf32>
    %266 = vector.shape_cast %265 : vector<8xf32> to vector<8x1xf32>
    %267 = tpu.reciprocal %266 : vector<8x1xf32> -> vector<8x1xf32>
    %268 = vector.broadcast %267 : vector<8x1xf32> to vector<8x16xf32>
    %269 = arith.mulf %264, %268 : vector<8x16xf32>
    %cst_77 = arith.constant dense<0.000000e+00> : vector<8x8xf32>
    %270 = tpu.matmul %269, %258, %cst_77 {dimension_numbers = #tpu.dot_dimension_numbers<[1], [0], [0], [1], [0, 0, 1, 1], [], []>} : vector<8x16xf32>, vector<16x8xf32>, vector<8x8xf32> -> vector<8x8xf32>
    %271 = vector.extract_strided_slice %223 {offsets = [0, 24], sizes = [8, 8], strides = [1, 1]} : vector<8x32xf32> to vector<8x8xf32>
    %272 = vector.extract_strided_slice %224 {offsets = [0, 24], sizes = [16, 8], strides = [1, 1]} : vector<16x32xf32> to vector<16x8xf32>
    %273 = vector.extract_strided_slice %225 {offsets = [0, 24], sizes = [16, 8], strides = [1, 1]} : vector<16x32xf32> to vector<16x8xf32>
    %cst_78 = arith.constant dense<0.000000e+00> : vector<8x16xf32>
    %274 = tpu.matmul %271, %272, %cst_78 {dimension_numbers = #tpu.dot_dimension_numbers<[1], [1], [0], [0], [0, 0, 1, 0], [], []>} : vector<8x8xf32>, vector<16x8xf32>, vector<8x16xf32> -> vector<8x16xf32>
    %cst_79 = arith.constant dense<0xFF800000> : vector<8xf32>
    %275 = vector.multi_reduction <maximumf>, %274, %cst_79 [1] : vector<8x16xf32> to vector<8xf32>
    %276 = vector.shape_cast %275 : vector<8xf32> to vector<8x1xf32>
    %277 = vector.broadcast %276 : vector<8x1xf32> to vector<8x16xf32>
    %278 = arith.subf %274, %277 : vector<8x16xf32>
    %279 = math.exp %278 : vector<8x16xf32>
    %cst_80 = arith.constant dense<0.000000e+00> : vector<8xf32>
    %280 = vector.multi_reduction <add>, %279, %cst_80 [1] : vector<8x16xf32> to vector<8xf32>
    %281 = vector.shape_cast %280 : vector<8xf32> to vector<8x1xf32>
    %282 = tpu.reciprocal %281 : vector<8x1xf32> -> vector<8x1xf32>
    %283 = vector.broadcast %282 : vector<8x1xf32> to vector<8x16xf32>
    %284 = arith.mulf %279, %283 : vector<8x16xf32>
    %cst_81 = arith.constant dense<0.000000e+00> : vector<8x8xf32>
    %285 = tpu.matmul %284, %273, %cst_81 {dimension_numbers = #tpu.dot_dimension_numbers<[1], [0], [0], [1], [0, 0, 1, 1], [], []>} : vector<8x16xf32>, vector<16x8xf32>, vector<8x8xf32> -> vector<8x8xf32>
    %286 = tpu.concatenate %240, %255, %270, %285 in 1 : vector<8x8xf32>, vector<8x8xf32>, vector<8x8xf32>, vector<8x8xf32> -> vector<8x32xf32>
    %287 = tpu.concatenate %94, %158, %222, %286 in 0 : vector<8x32xf32>, vector<8x32xf32>, vector<8x32xf32>, vector<8x32xf32> -> vector<32x32xf32>
    %c0_82 = arith.constant 0 : index
    %c0_83 = arith.constant 0 : index
    %288 = vector.load %arg7[%c0_82, %c0_83] : memref<32x128xf32, #tpu.memory_space<vmem>>, vector<32x128xf32>
    %cst_84 = arith.constant dense<0.000000e+00> : vector<32x128xf32>
    %289 = tpu.matmul %287, %288, %cst_84 {dimension_numbers = #tpu.dot_dimension_numbers<[1], [0], [0], [1], [0, 0, 1, 1], [], []>} : vector<32x32xf32>, vector<32x128xf32>, vector<32x128xf32> -> vector<32x128xf32>
    %c0_85 = arith.constant 0 : index
    %c0_86 = arith.constant 0 : index
    %290 = vector.load %arg8[%c0_85, %c0_86] : memref<1x128xf32, #tpu.memory_space<vmem>>, vector<1x128xf32>
    %291 = vector.broadcast %290 : vector<1x128xf32> to vector<32x128xf32>
    %292 = arith.addf %289, %291 : vector<32x128xf32>
    %c0_87 = arith.constant 0 : index
    %c0_88 = arith.constant 0 : index
    %293 = vector.load %arg9[%c0_87, %c0_88] : memref<32x128xf32, #tpu.memory_space<vmem>>, vector<32x128xf32>
    tpu.vector_store %arg9[%c0_87, %c0_88], %292 {strides = array<i32>} : memref<32x128xf32, #tpu.memory_space<vmem>>, vector<32x128xf32>,
    return
  }
  func.func @transform_0(%arg0: i32) -> (i32, i32) {
    %c0_i32 = arith.constant 0 : i32
    %c0_i32_0 = arith.constant 0 : i32
    return %arg0, %c0_i32 : i32, i32
  }
  func.func @transform_1(%arg0: i32) -> (i32, i32) {
    %c0_i32 = arith.constant 0 : i32
    %c0_i32_0 = arith.constant 0 : i32
    return %arg0, %c0_i32 : i32, i32
  }
  func.func @transform_2(%arg0: i32) -> (i32, i32) {
    %c0_i32 = arith.constant 0 : i32
    %c0_i32_0 = arith.constant 0 : i32
    %c0_i32_1 = arith.constant 0 : i32
    return %c0_i32, %c0_i32_0 : i32, i32
  }
  func.func @transform_3(%arg0: i32) -> (i32, i32) {
    %c0_i32 = arith.constant 0 : i32
    %c0_i32_0 = arith.constant 0 : i32
    %c0_i32_1 = arith.constant 0 : i32
    return %c0_i32, %c0_i32_0 : i32, i32
  }
  func.func @transform_4(%arg0: i32) -> (i32, i32) {
    %c0_i32 = arith.constant 0 : i32
    %c0_i32_0 = arith.constant 0 : i32
    %c0_i32_1 = arith.constant 0 : i32
    return %c0_i32, %c0_i32_0 : i32, i32
  }
  func.func @transform_5(%arg0: i32) -> (i32, i32) {
    %c0_i32 = arith.constant 0 : i32
    %c0_i32_0 = arith.constant 0 : i32
    %c0_i32_1 = arith.constant 0 : i32
    return %c0_i32, %c0_i32_0 : i32, i32
  }
  func.func @transform_6(%arg0: i32) -> (i32, i32) {
    %c0_i32 = arith.constant 0 : i32
    %c0_i32_0 = arith.constant 0 : i32
    %c0_i32_1 = arith.constant 0 : i32
    return %c0_i32, %c0_i32_0 : i32, i32
  }
  func.func @transform_7(%arg0: i32) -> (i32, i32) {
    %c0_i32 = arith.constant 0 : i32
    %c0_i32_0 = arith.constant 0 : i32
    %c0_i32_1 = arith.constant 0 : i32
    return %c0_i32, %c0_i32_0 : i32, i32
  }
  func.func @transform_8(%arg0: i32) -> (i32, i32) {
    %c0_i32 = arith.constant 0 : i32
    %c0_i32_0 = arith.constant 0 : i32
    return %arg0, %c0_i32 : i32, i32
  }
}

</mosaic_0001>

<llo_original>
// kernel: tpu_custom_call.1
$region0: #{tpu_custom_call.1}
  #allocation0 [shape = 'u32[]', space=smem, size = 0x4, offset = 0x4, fixed_abs, tag = 'smem constant byte address 0x4 - core index']
  #allocation1 [shape = 'u32[72,128]{1,0:T(1,128)}', space=vmem, size = 0x9000, scoped, tag = 'internal scratch']
  %s0 = inlined_call_operand.vmem [shape: f32[32,32], index: 0, kind: input, shape index: {}]
  %s1 = inlined_call_operand.vmem [shape: f32[64,32], index: 1, kind: input, shape index: {}]
  %s2 = inlined_call_operand.vmem [shape: f32[1,32], index: 2, kind: input, shape index: {}]
  %s3 = inlined_call_operand.hbm [shape: f32[1,32], index: 3, kind: input, shape index: {}]
  %s4 = inlined_call_operand.vmem [shape: f32[32,32], index: 4, kind: input, shape index: {}]
  %s5 = inlined_call_operand.vmem [shape: f32[32,64], index: 5, kind: input, shape index: {}]
  %s6 = inlined_call_operand.hbm [shape: f32[32,128], index: 6, kind: input, shape index: {}]
  %s7 = inlined_call_operand.vmem [shape: f32[1,128], index: 7, kind: input, shape index: {}]
  %s8 = inlined_call_operand.hbm [shape: f32[32,128], index: 8, kind: output, shape index: {}]
  %s9 = sld [smem:[#allocation0]]
  $region50: #{tpu_custom_call.1} parent=0
    _
  %s11 = ssub.s32 1, %s9
  %s12 = scalar_select 0, %s11, %s9
  $region1: #{tpu_custom_call.1} parent=0
    #allocation2 [shape = 'u8[512]{0}', space=vmem, size = 0x400, scoped, tag = 'input window, operand 3, single buffered']
    #allocation3 [shape = 's32[1]{0}', space=sflag, size = 0x4, scoped, tag = 'scoped memory for tpu_custom_call.1']
    #allocation4 [shape = 's32[1]{0}', space=sflag, size = 0x4, scoped, tag = 'scoped memory for tpu_custom_call.1']
    #allocation5 [shape = 'u8[16384]{0}', space=vmem, size = 0x4000, scoped, tag = 'input window, operand 6, single buffered']
    #allocation6 [shape = 's32[1]{0}', space=sflag, size = 0x4, scoped, tag = 'scoped memory for tpu_custom_call.1']
    #allocation7 [shape = 'u8[16384]{0}', space=vmem, size = 0x4000, scoped, tag = 'output window, operand 0, single buffered']
    %13 = vsyncpa [#allocation3], 0
    %14 = vsyncpa [#allocation6], 0
    %15 = vsyncpa [#allocation4], 0
    // Predicated region
    $region2: #{tpu_custom_call.1} parent=1 // pred_check
      _
    $region3: #{tpu_custom_call.1} parent=1 // pred_check_branch
      %17 = sbr.rel (0) target = $region5
    $region4: #{tpu_custom_call.1} parent=1 // pred_region
      _
    $region5: #{tpu_custom_call.1} parent=1 // pred_fallthru
      _
    // Predicated region
    $region6: #{tpu_custom_call.1} parent=1 // pred_check
      _
    $region7: #{tpu_custom_call.1} parent=1 // pred_check_branch
      %19 = sbr.rel (0) target = $region9
    $region8: #{tpu_custom_call.1} parent=1 // pred_region
      _
    $region9: #{tpu_custom_call.1} parent=1 // pred_fallthru
      _
    // Predicated region
    $region10: #{tpu_custom_call.1} parent=1 // pred_check
      _
    $region11: #{tpu_custom_call.1} parent=1 // pred_check_branch
      %21 = sbr.rel (0) target = $region13
    $region12: #{tpu_custom_call.1} parent=1 // pred_region
      _
    $region13: #{tpu_custom_call.1} parent=1 // pred_fallthru
      _
    // Predicated region
    $region14: #{tpu_custom_call.1} parent=1 // pred_check
      _
    $region15: #{tpu_custom_call.1} parent=1 // pred_check_branch
      %23 = sbr.rel (0) target = $region17
    $region16: #{tpu_custom_call.1} parent=1 // pred_region
      %25 = vsyncadd [#allocation3], 0
      %s27 = sshll.u32 %s3, 4
      %s28 = int_to_ptr.hbm [resolvable:$true] %s27
      %s29 = sshll.u32 [#allocation2], 4
      %s30 = int_to_ptr.vmem [resolvable:$true] %s29
      %32 = dma.hbm_to_vmem [thread:$0]  %s28, 16, %s30, [#allocation3]
    $region17: #{tpu_custom_call.1} parent=1 // pred_fallthru
      _
    // Predicated region
    $region18: #{tpu_custom_call.1} parent=1 // pred_check
      _
    $region19: #{tpu_custom_call.1} parent=1 // pred_check_branch
      %34 = sbr.rel (0) target = $region21
    $region20: #{tpu_custom_call.1} parent=1 // pred_region
      _
    $region21: #{tpu_custom_call.1} parent=1 // pred_fallthru
      _
    // Predicated region
    $region22: #{tpu_custom_call.1} parent=1 // pred_check
      _
    $region23: #{tpu_custom_call.1} parent=1 // pred_check_branch
      %36 = sbr.rel (0) target = $region25
    $region24: #{tpu_custom_call.1} parent=1 // pred_region
      _
    $region25: #{tpu_custom_call.1} parent=1 // pred_fallthru
      _
    // Predicated region
    $region26: #{tpu_custom_call.1} parent=1 // pred_check
      _
    $region27: #{tpu_custom_call.1} parent=1 // pred_check_branch
      %38 = sbr.rel (0) target = $region29
    $region28: #{tpu_custom_call.1} parent=1 // pred_region
      %40 = vsyncadd [#allocation6], 0
      %s41 = sshll.u32 %s6, 4
      %s42 = int_to_ptr.hbm [resolvable:$true] %s41
      %s43 = sshll.u32 [#allocation5], 4
      %s44 = int_to_ptr.vmem [resolvable:$true] %s43
      %49 = dma.hbm_to_vmem [thread:$0]  %s42, 512, %s44, [#allocation6], 128, 128, 8
    $region29: #{tpu_custom_call.1} parent=1 // pred_fallthru
      _
    // Predicated region
    $region30: #{tpu_custom_call.1} parent=1 // pred_check
      _
    $region31: #{tpu_custom_call.1} parent=1 // pred_check_branch
      %51 = sbr.rel (0) target = $region33
    $region32: #{tpu_custom_call.1} parent=1 // pred_region
      _
    $region33: #{tpu_custom_call.1} parent=1 // pred_fallthru
      _
    // Predicated region
    $region34: #{tpu_custom_call.1} parent=1 // pred_check
      _
    $region35: #{tpu_custom_call.1} parent=1 // pred_check_branch
      %53 = sbr.rel (0) target = $region37
    $region36: #{tpu_custom_call.1} parent=1 // pred_region
      %55 = dma.done [#allocation3], 16
    $region37: #{tpu_custom_call.1} parent=1 // pred_fallthru
      _
    // Predicated region
    $region38: #{tpu_custom_call.1} parent=1 // pred_check
      _
    $region39: #{tpu_custom_call.1} parent=1 // pred_check_branch
      %57 = sbr.rel (0) target = $region41
    $region40: #{tpu_custom_call.1} parent=1 // pred_region
      %59 = dma.done [#allocation6], 512
    $region41: #{tpu_custom_call.1} parent=1 // pred_fallthru
      _
    %v60 = vld [vmem:[%s0] sm:$0xff]
    %v61 = vld [vmem:[%s0 + $0x8] sm:$0xff]
    %v62 = vld [vmem:[%s0 + $0x10] sm:$0xff]
    %v63 = vld [vmem:[%s0 + $0x18] sm:$0xff]
    %vm64 = vcmask 261120
    %v65 = vsel %vm64, %v60, 0.0
    %66 = vadd.xlane.f32.xlu0 %v65
    %v67 = vpop.xlane.xlu0 %66
    %v68 = vsel %vm64, %v61, 0.0
    %69 = vadd.xlane.f32.xlu0 %v68
    %v70 = vpop.xlane.xlu0 %69
    %v71 = vsel %vm64, %v62, 0.0
    %72 = vadd.xlane.f32.xlu0 %v71
    %v73 = vpop.xlane.xlu0 %72
    %v74 = vsel %vm64, %v63, 0.0
    %75 = vadd.xlane.f32.xlu0 %v74
    %v76 = vpop.xlane.xlu0 %75
    %v77 = vrcp.pop 32.0
    %v78 = vmul.f32 32.0, %v77
    %v79 = vsub.f32 1.0, %v78
    %v80 = vmul.f32 %v77, %v79
    %v81 = vadd.f32 %v77, %v80
    %vm82 = vweird.f32 %v77
    %v83 = vsel %vm82, %v77, %v81
    %v84 = vmul.f32 %v67, %v83
    %v85 = vmul.f32 %v70, %v83
    %v86 = vmul.f32 %v73, %v83
    %v87 = vmul.f32 %v76, %v83
    %v88 = vsub.f32 %v60, %v84
    %v89 = vsub.f32 %v61, %v85
    %v90 = vsub.f32 %v62, %v86
    %v91 = vsub.f32 %v63, %v87
    %v92 = vmul.f32 %v88, %v88
    %v93 = vmul.f32 %v89, %v89
    %v94 = vmul.f32 %v90, %v90
    %v95 = vmul.f32 %v91, %v91
    %v96 = vsel %vm64, %v92, 0.0
    %97 = vadd.xlane.f32.xlu0 %v96
    %v98 = vpop.xlane.xlu0 %97
    %v99 = vsel %vm64, %v93, 0.0
    %100 = vadd.xlane.f32.xlu0 %v99
    %v101 = vpop.xlane.xlu0 %100
    %v102 = vsel %vm64, %v94, 0.0
    %103 = vadd.xlane.f32.xlu0 %v102
    %v104 = vpop.xlane.xlu0 %103
    %v105 = vsel %vm64, %v95, 0.0
    %106 = vadd.xlane.f32.xlu0 %v105
    %v107 = vpop.xlane.xlu0 %106
    %v108 = vmul.f32 %v98, %v83
    %v109 = vmul.f32 %v101, %v83
    %v110 = vmul.f32 %v104, %v83
    %v111 = vmul.f32 %v107, %v83
    %v112 = vadd.f32 %v108, 1e-05
    %v113 = vadd.f32 %v109, 1e-05
    %v114 = vadd.f32 %v110, 1e-05
    %v115 = vadd.f32 %v111, 1e-05
    %v116 = vrsqrt.pop %v112
    %v117 = vmul.f32 %v116, %v112
    %v118 = vmul.f32 %v117, %v116
    %v119 = vmul.f32 0.5, %v118
    %v120 = vsub.f32 1.5, %v119
    %v121 = vmul.f32 %v116, %v120
    %vm122 = vweird.f32 %v112
    %vm123 = vweird.f32 %v116
    %vm124 = vmor %vm122, %vm123
    %v125 = vsel %vm124, %v116, %v121
    %v126 = vrsqrt.pop %v113
    %v127 = vmul.f32 %v126, %v113
    %v128 = vmul.f32 %v127, %v126
    %v129 = vmul.f32 0.5, %v128
    %v130 = vsub.f32 1.5, %v129
    %v131 = vmul.f32 %v126, %v130
    %vm132 = vweird.f32 %v113
    %vm133 = vweird.f32 %v126
    %vm134 = vmor %vm132, %vm133
    %v135 = vsel %vm134, %v126, %v131
    %v136 = vrsqrt.pop %v114
    %v137 = vmul.f32 %v136, %v114
    %v138 = vmul.f32 %v137, %v136
    %v139 = vmul.f32 0.5, %v138
    %v140 = vsub.f32 1.5, %v139
    %v141 = vmul.f32 %v136, %v140
    %vm142 = vweird.f32 %v114
    %vm143 = vweird.f32 %v136
    %vm144 = vmor %vm142, %vm143
    %v145 = vsel %vm144, %v136, %v141
    %v146 = vrsqrt.pop %v115
    %v147 = vmul.f32 %v146, %v115
    %v148 = vmul.f32 %v147, %v146
    %v149 = vmul.f32 0.5, %v148
    %v150 = vsub.f32 1.5, %v149
    %v151 = vmul.f32 %v146, %v150
    %vm152 = vweird.f32 %v115
    %vm153 = vweird.f32 %v146
    %vm154 = vmor %vm152, %vm153
    %v155 = vsel %vm154, %v146, %v151
    %v156 = vmul.f32 %v88, %v125
    %v157 = vmul.f32 %v89, %v135
    %v158 = vmul.f32 %v90, %v145
    %v159 = vmul.f32 %v91, %v155
    %v160 = vld [vmem:[%s2] sm:$0x1]
    %v162 = vperm.slane %v160, 0
    %v164 = vmul.f32 %v156, %v162
    %v165 = vmul.f32 %v157, %v162
    %v166 = vmul.f32 %v158, %v162
    %v167 = vmul.f32 %v159, %v162
    %v168 = vld [vmem:[#allocation2] sm:$0x1]
    %v170 = vperm.slane %v168, 0
    %v172 = vadd.f32 %v164, %v170
    %v173 = vadd.f32 %v165, %v170
    %v174 = vadd.f32 %v166, %v170
    %v175 = vadd.f32 %v167, %v170
    %v176 = vld [vmem:[%s1] sm:$0xff]
    %v177 = vld [vmem:[%s1 + $0x8] sm:$0xff]
    %v178 = vld [vmem:[%s1 + $0x10] sm:$0xff]
    %v179 = vld [vmem:[%s1 + $0x18] sm:$0xff]
    %v180 = vld [vmem:[%s1 + $0x20] sm:$0xff]
    %v181 = vld [vmem:[%s1 + $0x28] sm:$0xff]
    %v182 = vld [vmem:[%s1 + $0x30] sm:$0xff]
    %v183 = vld [vmem:[%s1 + $0x38] sm:$0xff]
    %v184 = vld [vmem:[%s4] sm:$0xff]
    %v185 = vld [vmem:[%s4 + $0x8] sm:$0xff]
    %v186 = vld [vmem:[%s4 + $0x10] sm:$0xff]
    %v187 = vld [vmem:[%s4 + $0x18] sm:$0xff]
    %v189 = vsel %vm64, %v172, 0
    %v192 = vsel %vm64, %v173, 0
    %v195 = vsel %vm64, %v174, 0
    %v198 = vsel %vm64, %v175, 0
    %200 = vmatpush.msra.mxu0 0.0
    %201 = vmatpush.msra.mxu0 0.0
    %202 = vmatpush.msra.mxu0 0.0
    %203 = vmatpush.msra.mxu0 0.0
    %204 = vmatpush.msra.mxu0 0.0
    %205 = vmatpush.msra.mxu0 0.0
    %206 = vmatpush.msra.mxu0 0.0
    %207 = vmatpush.msra.mxu0 0.0
    %208 = vmatpush.msra.mxu0 0.0
    %209 = vmatpush.msra.mxu0 0.0
    %210 = vmatpush.msra.mxu0 0.0
    %211 = vmatpush.msra.mxu0 0.0
    %212 = vmatpush.msra.mxu0 %v187
    %213 = vmatpush.msra.mxu0 %v186
    %214 = vmatpush.msra.mxu0 %v185
    %215 = vmatpush.msra.mxu0 %v184
    %216 = vmatmul.f32.gmra.mxu0 %v189
    %v217 = vpop.f32.mrf.mxu0
    %v218 = vadd.f32 0.0, %v217
    %219 = vmatmul.f32.gmra.mxu0 %v192
    %v220 = vpop.f32.mrf.mxu0
    %v221 = vadd.f32 0.0, %v220
    %222 = vmatmul.f32.gmra.mxu0 %v195
    %v223 = vpop.f32.mrf.mxu0
    %v224 = vadd.f32 0.0, %v223
    %225 = vmatmul.f32.gmra.mxu0 %v198
    %v226 = vpop.f32.mrf.mxu0
    %v227 = vadd.f32 0.0, %v226
    %228 = vdwg.mxu0
    %v229 = vld [vmem:[%s5] sm:$0xff]
    %v230 = vld [vmem:[%s5 + $0x8] sm:$0xff]
    %v231 = vld [vmem:[%s5 + $0x10] sm:$0xff]
    %v232 = vld [vmem:[%s5 + $0x18] sm:$0xff]
    %v234 = vsel %vm64, %v176, 0
    %v237 = vsel %vm64, %v177, 0
    %v240 = vsel %vm64, %v178, 0
    %v243 = vsel %vm64, %v179, 0
    %v246 = vsel %vm64, %v180, 0
    %v249 = vsel %vm64, %v181, 0
    %v252 = vsel %vm64, %v182, 0
    %v255 = vsel %vm64, %v183, 0
    %257 = vmatpush.msra.mxu0 0.0
    %258 = vmatpush.msra.mxu0 0.0
    %259 = vmatpush.msra.mxu0 0.0
    %260 = vmatpush.msra.mxu0 0.0
    %261 = vmatpush.msra.mxu0 0.0
    %262 = vmatpush.msra.mxu0 0.0
    %263 = vmatpush.msra.mxu0 0.0
    %264 = vmatpush.msra.mxu0 0.0
    %265 = vmatpush.msra.mxu0 0.0
    %266 = vmatpush.msra.mxu0 0.0
    %267 = vmatpush.msra.mxu0 0.0
    %268 = vmatpush.msra.mxu0 0.0
    %269 = vmatpush.msra.mxu0 %v232
    %270 = vmatpush.msra.mxu0 %v231
    %271 = vmatpush.msra.mxu0 %v230
    %272 = vmatpush.msra.mxu0 %v229
    %273 = vmatmul.f32.gmra.mxu0 %v234
    %v274 = vpop.f32.mrf.mxu0
    %v275 = vadd.f32 0.0, %v274
    %276 = vmatmul.f32.gmra.mxu0 %v237
    %v277 = vpop.f32.mrf.mxu0
    %v278 = vadd.f32 0.0, %v277
    %279 = vmatmul.f32.gmra.mxu0 %v240
    %v280 = vpop.f32.mrf.mxu0
    %v281 = vadd.f32 0.0, %v280
    %282 = vmatmul.f32.gmra.mxu0 %v243
    %v283 = vpop.f32.mrf.mxu0
    %v284 = vadd.f32 0.0, %v283
    %285 = vmatmul.f32.gmra.mxu0 %v246
    %v286 = vpop.f32.mrf.mxu0
    %v287 = vadd.f32 0.0, %v286
    %288 = vmatmul.f32.gmra.mxu0 %v249
    %v289 = vpop.f32.mrf.mxu0
    %v290 = vadd.f32 0.0, %v289
    %291 = vmatmul.f32.gmra.mxu0 %v252
    %v292 = vpop.f32.mrf.mxu0
    %v293 = vadd.f32 0.0, %v292
    %294 = vmatmul.f32.gmra.mxu0 %v255
    %v295 = vpop.f32.mrf.mxu0
    %v296 = vadd.f32 0.0, %v295
    %297 = vdwg.mxu0
    %302 = vrot.lane.b32.xlu0 %v229, 96
    %v303 = vpop.permute.xlu0 %302
    %304 = vrot.lane.b32.xlu0 %v230, 96
    %v305 = vpop.permute.xlu0 %304
    %306 = vrot.lane.b32.xlu0 %v231, 96
    %v307 = vpop.permute.xlu0 %306
    %308 = vrot.lane.b32.xlu0 %v232, 96
    %v309 = vpop.permute.xlu0 %308
    %314 = vmatpush.msra.mxu0 0.0
    %315 = vmatpush.msra.mxu0 0.0
    %316 = vmatpush.msra.mxu0 0.0
    %317 = vmatpush.msra.mxu0 0.0
    %318 = vmatpush.msra.mxu0 0.0
    %319 = vmatpush.msra.mxu0 0.0
    %320 = vmatpush.msra.mxu0 0.0
    %321 = vmatpush.msra.mxu0 0.0
    %322 = vmatpush.msra.mxu0 0.0
    %323 = vmatpush.msra.mxu0 0.0
    %324 = vmatpush.msra.mxu0 0.0
    %325 = vmatpush.msra.mxu0 0.0
    %326 = vmatpush.msra.mxu0 %v309
    %327 = vmatpush.msra.mxu0 %v307
    %328 = vmatpush.msra.mxu0 %v305
    %329 = vmatpush.msra.mxu0 %v303
    %330 = vmatmul.f32.gmra.mxu0 %v234
    %v331 = vpop.f32.mrf.mxu0
    %v332 = vadd.f32 0.0, %v331
    %333 = vmatmul.f32.gmra.mxu0 %v237
    %v334 = vpop.f32.mrf.mxu0
    %v335 = vadd.f32 0.0, %v334
    %336 = vmatmul.f32.gmra.mxu0 %v240
    %v337 = vpop.f32.mrf.mxu0
    %v338 = vadd.f32 0.0, %v337
    %339 = vmatmul.f32.gmra.mxu0 %v243
    %v340 = vpop.f32.mrf.mxu0
    %v341 = vadd.f32 0.0, %v340
    %342 = vmatmul.f32.gmra.mxu0 %v246
    %v343 = vpop.f32.mrf.mxu0
    %v344 = vadd.f32 0.0, %v343
    %345 = vmatmul.f32.gmra.mxu0 %v249
    %v346 = vpop.f32.mrf.mxu0
    %v347 = vadd.f32 0.0, %v346
    %348 = vmatmul.f32.gmra.mxu0 %v252
    %v349 = vpop.f32.mrf.mxu0
    %v350 = vadd.f32 0.0, %v349
    %351 = vmatmul.f32.gmra.mxu0 %v255
    %v352 = vpop.f32.mrf.mxu0
    %v353 = vadd.f32 0.0, %v352
    %354 = vdwg.mxu0
    %vm355 = vcmask 64512
    %v357 = vsel %vm355, %v218, 0
    %v360 = vsel %vm355, %v275, 0
    %v363 = vsel %vm355, %v278, 0
    %365 = vmatpush.xpose.msra.mxu0 0.0
    %366 = vmatpush.xpose.msra.mxu0 0.0
    %367 = vmatpush.xpose.msra.mxu0 0.0
    %368 = vmatpush.xpose.msra.mxu0 0.0
    %369 = vmatpush.xpose.msra.mxu0 0.0
    %370 = vmatpush.xpose.msra.mxu0 0.0
    %371 = vmatpush.xpose.msra.mxu0 0.0
    %372 = vmatpush.xpose.msra.mxu0 0.0
    %373 = vmatpush.xpose.msra.mxu0 0.0
    %374 = vmatpush.xpose.msra.mxu0 0.0
    %375 = vmatpush.xpose.msra.mxu0 0.0
    %376 = vmatpush.xpose.msra.mxu0 0.0
    %377 = vmatpush.xpose.msra.mxu0 0.0
    %378 = vmatpush.xpose.msra.mxu0 0.0
    %379 = vmatpush.xpose.msra.mxu0 %v363
    %380 = vmatpush.xpose.msra.mxu0 %v360
    %381 = vmatmul.f32.gmra.mxu0 %v357
    %v382 = vpop.f32.mrf.mxu0
    %v383 = vadd.f32 0.0, %v382
    %384 = vdwg.mxu0
    %vm385 = vcmask 130048
    %v386 = vsel %vm385, %v383, -inf
    %387 = vmax.xlane.f32.xlu0 %v386
    %v388 = vpop.xlane.xlu0 %387
    %v389 = vsub.f32 %v383, %v388
    %v390 = vmul.f32 %v389, 1.442695
    %v391 = vpow.pop %v390
    %v392 = vsel %vm385, %v391, 0.0
    %393 = vadd.xlane.f32.xlu0 %v392
    %v394 = vpop.xlane.xlu0 %393
    %v395 = vrcp.pop %v394
    %v396 = vmul.f32 %v394, %v395
    %v397 = vsub.f32 1.0, %v396
    %v398 = vmul.f32 %v395, %v397
    %v399 = vadd.f32 %v395, %v398
    %vm400 = vweird.f32 %v394
    %vm401 = vweird.f32 %v395
    %vm402 = vmor %vm400, %vm401
    %v403 = vsel %vm402, %v395, %v399
    %v404 = vand.u32 2147483647, %v394
    %vm405 = vcmp.eq.f32.partialorder %v404, 8.507059e+37
    %v406 = vand.u32 %v394, 2147483648
    %v407 = vor.u32 1.1754944e-38, %v406
    %v408 = vsel %vm405, %v407, %v403
    %v409 = vmul.f32 %v391, %v408
    %v411 = vsel %vm385, %v409, 0
    %413 = vmatpush.msra.mxu0 0.0
    %414 = vmatpush.msra.mxu0 0.0
    %415 = vmatpush.msra.mxu0 0.0
    %416 = vmatpush.msra.mxu0 0.0
    %417 = vmatpush.msra.mxu0 0.0
    %418 = vmatpush.msra.mxu0 0.0
    %419 = vmatpush.msra.mxu0 0.0
    %420 = vmatpush.msra.mxu0 0.0
    %421 = vmatpush.msra.mxu0 0.0
    %422 = vmatpush.msra.mxu0 0.0
    %423 = vmatpush.msra.mxu0 0.0
    %424 = vmatpush.msra.mxu0 0.0
    %425 = vmatpush.msra.mxu0 0.0
    %426 = vmatpush.msra.mxu0 0.0
    %427 = vmatpush.msra.mxu0 %v335
    %428 = vmatpush.msra.mxu0 %v332
    %429 = vmatmul.f32.gmra.mxu0 %v411
    %v430 = vpop.f32.mrf.mxu0
    %v431 = vadd.f32 0.0, %v430
    %432 = vdwg.mxu0
    %433 = vrot.lane.b32.xlu0 %v218, 120
    %v434 = vpop.permute.xlu0 %433
    %435 = vrot.lane.b32.xlu0 %v275, 120
    %v436 = vpop.permute.xlu0 %435
    %437 = vrot.lane.b32.xlu0 %v278, 120
    %v438 = vpop.permute.xlu0 %437
    %v439 = vsel %vm355, %v434, 0
    %v441 = vsel %vm355, %v436, 0
    %v443 = vsel %vm355, %v438, 0
    %445 = vmatpush.xpose.msra.mxu0 0.0
    %446 = vmatpush.xpose.msra.mxu0 0.0
    %447 = vmatpush.xpose.msra.mxu0 0.0
    %448 = vmatpush.xpose.msra.mxu0 0.0
    %449 = vmatpush.xpose.msra.mxu0 0.0
    %450 = vmatpush.xpose.msra.mxu0 0.0
    %451 = vmatpush.xpose.msra.mxu0 0.0
    %452 = vmatpush.xpose.msra.mxu0 0.0
    %453 = vmatpush.xpose.msra.mxu0 0.0
    %454 = vmatpush.xpose.msra.mxu0 0.0
    %455 = vmatpush.xpose.msra.mxu0 0.0
    %456 = vmatpush.xpose.msra.mxu0 0.0
    %457 = vmatpush.xpose.msra.mxu0 0.0
    %458 = vmatpush.xpose.msra.mxu0 0.0
    %459 = vmatpush.xpose.msra.mxu0 %v443
    %460 = vmatpush.xpose.msra.mxu0 %v441
    %461 = vmatmul.f32.gmra.mxu0 %v439
    %v462 = vpop.f32.mrf.mxu0
    %v463 = vadd.f32 0.0, %v462
    %464 = vdwg.mxu0
    %v465 = vsel %vm385, %v463, -inf
    %466 = vmax.xlane.f32.xlu0 %v465
    %v467 = vpop.xlane.xlu0 %466
    %v468 = vsub.f32 %v463, %v467
    %v469 = vmul.f32 %v468, 1.442695
    %v470 = vpow.pop %v469
    %v471 = vsel %vm385, %v470, 0.0
    %472 = vadd.xlane.f32.xlu0 %v471
    %v473 = vpop.xlane.xlu0 %472
    %v474 = vrcp.pop %v473
    %v475 = vmul.f32 %v473, %v474
    %v476 = vsub.f32 1.0, %v475
    %v477 = vmul.f32 %v474, %v476
    %v478 = vadd.f32 %v474, %v477
    %vm479 = vweird.f32 %v473
    %vm480 = vweird.f32 %v474
    %vm481 = vmor %vm479, %vm480
    %v482 = vsel %vm481, %v474, %v478
    %v483 = vand.u32 2147483647, %v473
    %vm484 = vcmp.eq.f32.partialorder %v483, 8.507059e+37
    %v485 = vand.u32 %v473, 2147483648
    %v486 = vor.u32 1.1754944e-38, %v485
    %v487 = vsel %vm484, %v486, %v482
    %v488 = vmul.f32 %v470, %v487
    %491 = vrot.lane.b32.xlu0 %v332, 120
    %v492 = vpop.permute.xlu0 %491
    %493 = vrot.lane.b32.xlu0 %v335, 120
    %v494 = vpop.permute.xlu0 %493
    %v498 = vsel %vm385, %v488, 0
    %500 = vmatpush.msra.mxu0 0.0
    %501 = vmatpush.msra.mxu0 0.0
    %502 = vmatpush.msra.mxu0 0.0
    %503 = vmatpush.msra.mxu0 0.0
    %504 = vmatpush.msra.mxu0 0.0
    %505 = vmatpush.msra.mxu0 0.0
    %506 = vmatpush.msra.mxu0 0.0
    %507 = vmatpush.msra.mxu0 0.0
    %508 = vmatpush.msra.mxu0 0.0
    %509 = vmatpush.msra.mxu0 0.0
    %510 = vmatpush.msra.mxu0 0.0
    %511 = vmatpush.msra.mxu0 0.0
    %512 = vmatpush.msra.mxu0 0.0
    %513 = vmatpush.msra.mxu0 0.0
    %514 = vmatpush.msra.mxu0 %v494
    %515 = vmatpush.msra.mxu0 %v492
    %516 = vmatmul.f32.gmra.mxu0 %v498
    %v517 = vpop.f32.mrf.mxu0
    %v518 = vadd.f32 0.0, %v517
    %519 = vdwg.mxu0
    %520 = vrot.lane.b32.xlu0 %v218, 112
    %v521 = vpop.permute.xlu0 %520
    %522 = vrot.lane.b32.xlu0 %v275, 112
    %v523 = vpop.permute.xlu0 %522
    %524 = vrot.lane.b32.xlu0 %v278, 112
    %v525 = vpop.permute.xlu0 %524
    %v526 = vsel %vm355, %v521, 0
    %v528 = vsel %vm355, %v523, 0
    %v530 = vsel %vm355, %v525, 0
    %532 = vmatpush.xpose.msra.mxu0 0.0
    %533 = vmatpush.xpose.msra.mxu0 0.0
    %534 = vmatpush.xpose.msra.mxu0 0.0
    %535 = vmatpush.xpose.msra.mxu0 0.0
    %536 = vmatpush.xpose.msra.mxu0 0.0
    %537 = vmatpush.xpose.msra.mxu0 0.0
    %538 = vmatpush.xpose.msra.mxu0 0.0
    %539 = vmatpush.xpose.msra.mxu0 0.0
    %540 = vmatpush.xpose.msra.mxu0 0.0
    %541 = vmatpush.xpose.msra.mxu0 0.0
    %542 = vmatpush.xpose.msra.mxu0 0.0
    %543 = vmatpush.xpose.msra.mxu0 0.0
    %544 = vmatpush.xpose.msra.mxu0 0.0
    %545 = vmatpush.xpose.msra.mxu0 0.0
    %546 = vmatpush.xpose.msra.mxu0 %v530
    %547 = vmatpush.xpose.msra.mxu0 %v528
    %548 = vmatmul.f32.gmra.mxu0 %v526
    %v549 = vpop.f32.mrf.mxu0
    %v550 = vadd.f32 0.0, %v549
    %551 = vdwg.mxu0
    %v552 = vsel %vm385, %v550, -inf
    %553 = vmax.xlane.f32.xlu0 %v552
    %v554 = vpop.xlane.xlu0 %553
    %v555 = vsub.f32 %v550, %v554
    %v556 = vmul.f32 %v555, 1.442695
    %v557 = vpow.pop %v556
    %v558 = vsel %vm385, %v557, 0.0
    %559 = vadd.xlane.f32.xlu0 %v558
    %v560 = vpop.xlane.xlu0 %559
    %v561 = vrcp.pop %v560
    %v562 = vmul.f32 %v560, %v561
    %v563 = vsub.f32 1.0, %v562
    %v564 = vmul.f32 %v561, %v563
    %v565 = vadd.f32 %v561, %v564
    %vm566 = vweird.f32 %v560
    %vm567 = vweird.f32 %v561
    %vm568 = vmor %vm566, %vm567
    %v569 = vsel %vm568, %v561, %v565
    %v570 = vand.u32 2147483647, %v560
    %vm571 = vcmp.eq.f32.partialorder %v570, 8.507059e+37
    %v572 = vand.u32 %v560, 2147483648
    %v573 = vor.u32 1.1754944e-38, %v572
    %v574 = vsel %vm571, %v573, %v569
    %v575 = vmul.f32 %v557, %v574
    %576 = vrot.lane.b32.xlu0 %v332, 112
    %v577 = vpop.permute.xlu0 %576
    %578 = vrot.lane.b32.xlu0 %v335, 112
    %v579 = vpop.permute.xlu0 %578
    %v583 = vsel %vm385, %v575, 0
    %585 = vmatpush.msra.mxu0 0.0
    %586 = vmatpush.msra.mxu0 0.0
    %587 = vmatpush.msra.mxu0 0.0
    %588 = vmatpush.msra.mxu0 0.0
    %589 = vmatpush.msra.mxu0 0.0
    %590 = vmatpush.msra.mxu0 0.0
    %591 = vmatpush.msra.mxu0 0.0
    %592 = vmatpush.msra.mxu0 0.0
    %593 = vmatpush.msra.mxu0 0.0
    %594 = vmatpush.msra.mxu0 0.0
    %595 = vmatpush.msra.mxu0 0.0
    %596 = vmatpush.msra.mxu0 0.0
    %597 = vmatpush.msra.mxu0 0.0
    %598 = vmatpush.msra.mxu0 0.0
    %599 = vmatpush.msra.mxu0 %v579
    %600 = vmatpush.msra.mxu0 %v577
    %601 = vmatmul.f32.gmra.mxu0 %v583
    %v602 = vpop.f32.mrf.mxu0
    %v603 = vadd.f32 0.0, %v602
    %604 = vdwg.mxu0
    %605 = vrot.lane.b32.xlu0 %v218, 104
    %v606 = vpop.permute.xlu0 %605
    %607 = vrot.lane.b32.xlu0 %v275, 104
    %v608 = vpop.permute.xlu0 %607
    %609 = vrot.lane.b32.xlu0 %v278, 104
    %v610 = vpop.permute.xlu0 %609
    %v611 = vsel %vm355, %v606, 0
    %v613 = vsel %vm355, %v608, 0
    %v615 = vsel %vm355, %v610, 0
    %617 = vmatpush.xpose.msra.mxu0 0.0
    %618 = vmatpush.xpose.msra.mxu0 0.0
    %619 = vmatpush.xpose.msra.mxu0 0.0
    %620 = vmatpush.xpose.msra.mxu0 0.0
    %621 = vmatpush.xpose.msra.mxu0 0.0
    %622 = vmatpush.xpose.msra.mxu0 0.0
    %623 = vmatpush.xpose.msra.mxu0 0.0
    %624 = vmatpush.xpose.msra.mxu0 0.0
    %625 = vmatpush.xpose.msra.mxu0 0.0
    %626 = vmatpush.xpose.msra.mxu0 0.0
    %627 = vmatpush.xpose.msra.mxu0 0.0
    %628 = vmatpush.xpose.msra.mxu0 0.0
    %629 = vmatpush.xpose.msra.mxu0 0.0
    %630 = vmatpush.xpose.msra.mxu0 0.0
    %631 = vmatpush.xpose.msra.mxu0 %v615
    %632 = vmatpush.xpose.msra.mxu0 %v613
    %633 = vmatmul.f32.gmra.mxu0 %v611
    %v634 = vpop.f32.mrf.mxu0
    %v635 = vadd.f32 0.0, %v634
    %636 = vdwg.mxu0
    %v637 = vsel %vm385, %v635, -inf
    %638 = vmax.xlane.f32.xlu0 %v637
    %v639 = vpop.xlane.xlu0 %638
    %v640 = vsub.f32 %v635, %v639
    %v641 = vmul.f32 %v640, 1.442695
    %v642 = vpow.pop %v641
    %v643 = vsel %vm385, %v642, 0.0
    %644 = vadd.xlane.f32.xlu0 %v643
    %v645 = vpop.xlane.xlu0 %644
    %v646 = vrcp.pop %v645
    %v647 = vmul.f32 %v645, %v646
    %v648 = vsub.f32 1.0, %v647
    %v649 = vmul.f32 %v646, %v648
    %v650 = vadd.f32 %v646, %v649
    %vm651 = vweird.f32 %v645
    %vm652 = vweird.f32 %v646
    %vm653 = vmor %vm651, %vm652
    %v654 = vsel %vm653, %v646, %v650
    %v655 = vand.u32 2147483647, %v645
    %vm656 = vcmp.eq.f32.partialorder %v655, 8.507059e+37
    %v657 = vand.u32 %v645, 2147483648
    %v658 = vor.u32 1.1754944e-38, %v657
    %v659 = vsel %vm656, %v658, %v654
    %v660 = vmul.f32 %v642, %v659
    %661 = vrot.lane.b32.xlu0 %v332, 104
    %v662 = vpop.permute.xlu0 %661
    %663 = vrot.lane.b32.xlu0 %v335, 104
    %v664 = vpop.permute.xlu0 %663
    %v668 = vsel %vm385, %v660, 0
    %670 = vmatpush.msra.mxu0 0.0
    %671 = vmatpush.msra.mxu0 0.0
    %672 = vmatpush.msra.mxu0 0.0
    %673 = vmatpush.msra.mxu0 0.0
    %674 = vmatpush.msra.mxu0 0.0
    %675 = vmatpush.msra.mxu0 0.0
    %676 = vmatpush.msra.mxu0 0.0
    %677 = vmatpush.msra.mxu0 0.0
    %678 = vmatpush.msra.mxu0 0.0
    %679 = vmatpush.msra.mxu0 0.0
    %680 = vmatpush.msra.mxu0 0.0
    %681 = vmatpush.msra.mxu0 0.0
    %682 = vmatpush.msra.mxu0 0.0
    %683 = vmatpush.msra.mxu0 0.0
    %684 = vmatpush.msra.mxu0 %v664
    %685 = vmatpush.msra.mxu0 %v662
    %686 = vmatmul.f32.gmra.mxu0 %v668
    %v687 = vpop.f32.mrf.mxu0
    %v688 = vadd.f32 0.0, %v687
    %689 = vdwg.mxu0
    %691 = vrot.lane.b32.xlu0 %v518, 8
    %v692 = vpop.permute.xlu0 %691
    %695 = vrot.lane.b32.xlu0 %v603, 16
    %v696 = vpop.permute.xlu0 %695
    %699 = vrot.lane.b32.xlu0 %v688, 24
    %v700 = vpop.permute.xlu0 %699
    %v702 = vsel %vm355, %v431, %v692
    %v703 = vsel %vm385, %v702, %v696
    %vm704 = vcmask 195584
    %v705 = vsel %vm704, %v703, %v700
    %v707 = vsel %vm355, %v221, 0
    %v710 = vsel %vm355, %v281, 0
    %v713 = vsel %vm355, %v284, 0
    %715 = vmatpush.xpose.msra.mxu0 0.0
    %716 = vmatpush.xpose.msra.mxu0 0.0
    %717 = vmatpush.xpose.msra.mxu0 0.0
    %718 = vmatpush.xpose.msra.mxu0 0.0
    %719 = vmatpush.xpose.msra.mxu0 0.0
    %720 = vmatpush.xpose.msra.mxu0 0.0
    %721 = vmatpush.xpose.msra.mxu0 0.0
    %722 = vmatpush.xpose.msra.mxu0 0.0
    %723 = vmatpush.xpose.msra.mxu0 0.0
    %724 = vmatpush.xpose.msra.mxu0 0.0
    %725 = vmatpush.xpose.msra.mxu0 0.0
    %726 = vmatpush.xpose.msra.mxu0 0.0
    %727 = vmatpush.xpose.msra.mxu0 0.0
    %728 = vmatpush.xpose.msra.mxu0 0.0
    %729 = vmatpush.xpose.msra.mxu0 %v713
    %730 = vmatpush.xpose.msra.mxu0 %v710
    %731 = vmatmul.f32.gmra.mxu0 %v707
    %v732 = vpop.f32.mrf.mxu0
    %v733 = vadd.f32 0.0, %v732
    %734 = vdwg.mxu0
    %v735 = vsel %vm385, %v733, -inf
    %736 = vmax.xlane.f32.xlu0 %v735
    %v737 = vpop.xlane.xlu0 %736
    %v738 = vsub.f32 %v733, %v737
    %v739 = vmul.f32 %v738, 1.442695
    %v740 = vpow.pop %v739
    %v741 = vsel %vm385, %v740, 0.0
    %742 = vadd.xlane.f32.xlu0 %v741
    %v743 = vpop.xlane.xlu0 %742
    %v744 = vrcp.pop %v743
    %v745 = vmul.f32 %v743, %v744
    %v746 = vsub.f32 1.0, %v745
    %v747 = vmul.f32 %v744, %v746
    %v748 = vadd.f32 %v744, %v747
    %vm749 = vweird.f32 %v743
    %vm750 = vweird.f32 %v744
    %vm751 = vmor %vm749, %vm750
    %v752 = vsel %vm751, %v744, %v748
    %v753 = vand.u32 2147483647, %v743
    %vm754 = vcmp.eq.f32.partialorder %v753, 8.507059e+37
    %v755 = vand.u32 %v743, 2147483648
    %v756 = vor.u32 1.1754944e-38, %v755
    %v757 = vsel %vm754, %v756, %v752
    %v758 = vmul.f32 %v740, %v757
    %v760 = vsel %vm385, %v758, 0
    %762 = vmatpush.msra.mxu0 0.0
    %763 = vmatpush.msra.mxu0 0.0
    %764 = vmatpush.msra.mxu0 0.0
    %765 = vmatpush.msra.mxu0 0.0
    %766 = vmatpush.msra.mxu0 0.0
    %767 = vmatpush.msra.mxu0 0.0
    %768 = vmatpush.msra.mxu0 0.0
    %769 = vmatpush.msra.mxu0 0.0
    %770 = vmatpush.msra.mxu0 0.0
    %771 = vmatpush.msra.mxu0 0.0
    %772 = vmatpush.msra.mxu0 0.0
    %773 = vmatpush.msra.mxu0 0.0
    %774 = vmatpush.msra.mxu0 0.0
    %775 = vmatpush.msra.mxu0 0.0
    %776 = vmatpush.msra.mxu0 %v341
    %777 = vmatpush.msra.mxu0 %v338
    %778 = vmatmul.f32.gmra.mxu0 %v760
    %v779 = vpop.f32.mrf.mxu0
    %v780 = vadd.f32 0.0, %v779
    %781 = vdwg.mxu0
    %782 = vrot.lane.b32.xlu0 %v221, 120
    %v783 = vpop.permute.xlu0 %782
    %784 = vrot.lane.b32.xlu0 %v281, 120
    %v785 = vpop.permute.xlu0 %784
    %786 = vrot.lane.b32.xlu0 %v284, 120
    %v787 = vpop.permute.xlu0 %786
    %v788 = vsel %vm355, %v783, 0
    %v790 = vsel %vm355, %v785, 0
    %v792 = vsel %vm355, %v787, 0
    %794 = vmatpush.xpose.msra.mxu0 0.0
    %795 = vmatpush.xpose.msra.mxu0 0.0
    %796 = vmatpush.xpose.msra.mxu0 0.0
    %797 = vmatpush.xpose.msra.mxu0 0.0
    %798 = vmatpush.xpose.msra.mxu0 0.0
    %799 = vmatpush.xpose.msra.mxu0 0.0
    %800 = vmatpush.xpose.msra.mxu0 0.0
    %801 = vmatpush.xpose.msra.mxu0 0.0
    %802 = vmatpush.xpose.msra.mxu0 0.0
    %803 = vmatpush.xpose.msra.mxu0 0.0
    %804 = vmatpush.xpose.msra.mxu0 0.0
    %805 = vmatpush.xpose.msra.mxu0 0.0
    %806 = vmatpush.xpose.msra.mxu0 0.0
    %807 = vmatpush.xpose.msra.mxu0 0.0
    %808 = vmatpush.xpose.msra.mxu0 %v792
    %809 = vmatpush.xpose.msra.mxu0 %v790
    %810 = vmatmul.f32.gmra.mxu0 %v788
    %v811 = vpop.f32.mrf.mxu0
    %v812 = vadd.f32 0.0, %v811
    %813 = vdwg.mxu0
    %v814 = vsel %vm385, %v812, -inf
    %815 = vmax.xlane.f32.xlu0 %v814
    %v816 = vpop.xlane.xlu0 %815
    %v817 = vsub.f32 %v812, %v816
    %v818 = vmul.f32 %v817, 1.442695
    %v819 = vpow.pop %v818
    %v820 = vsel %vm385, %v819, 0.0
    %821 = vadd.xlane.f32.xlu0 %v820
    %v822 = vpop.xlane.xlu0 %821
    %v823 = vrcp.pop %v822
    %v824 = vmul.f32 %v822, %v823
    %v825 = vsub.f32 1.0, %v824
    %v826 = vmul.f32 %v823, %v825
    %v827 = vadd.f32 %v823, %v826
    %vm828 = vweird.f32 %v822
    %vm829 = vweird.f32 %v823
    %vm830 = vmor %vm828, %vm829
    %v831 = vsel %vm830, %v823, %v827
    %v832 = vand.u32 2147483647, %v822
    %vm833 = vcmp.eq.f32.partialorder %v832, 8.507059e+37
    %v834 = vand.u32 %v822, 2147483648
    %v835 = vor.u32 1.1754944e-38, %v834
    %v836 = vsel %vm833, %v835, %v831
    %v837 = vmul.f32 %v819, %v836
    %840 = vrot.lane.b32.xlu0 %v338, 120
    %v841 = vpop.permute.xlu0 %840
    %842 = vrot.lane.b32.xlu0 %v341, 120
    %v843 = vpop.permute.xlu0 %842
    %v847 = vsel %vm385, %v837, 0
    %849 = vmatpush.msra.mxu0 0.0
    %850 = vmatpush.msra.mxu0 0.0
    %851 = vmatpush.msra.mxu0 0.0
    %852 = vmatpush.msra.mxu0 0.0
    %853 = vmatpush.msra.mxu0 0.0
    %854 = vmatpush.msra.mxu0 0.0
    %855 = vmatpush.msra.mxu0 0.0
    %856 = vmatpush.msra.mxu0 0.0
    %857 = vmatpush.msra.mxu0 0.0
    %858 = vmatpush.msra.mxu0 0.0
    %859 = vmatpush.msra.mxu0 0.0
    %860 = vmatpush.msra.mxu0 0.0
    %861 = vmatpush.msra.mxu0 0.0
    %862 = vmatpush.msra.mxu0 0.0
    %863 = vmatpush.msra.mxu0 %v843
    %864 = vmatpush.msra.mxu0 %v841
    %865 = vmatmul.f32.gmra.mxu0 %v847
    %v866 = vpop.f32.mrf.mxu0
    %v867 = vadd.f32 0.0, %v866
    %868 = vdwg.mxu0
    %869 = vrot.lane.b32.xlu0 %v221, 112
    %v870 = vpop.permute.xlu0 %869
    %871 = vrot.lane.b32.xlu0 %v281, 112
    %v872 = vpop.permute.xlu0 %871
    %873 = vrot.lane.b32.xlu0 %v284, 112
    %v874 = vpop.permute.xlu0 %873
    %v875 = vsel %vm355, %v870, 0
    %v877 = vsel %vm355, %v872, 0
    %v879 = vsel %vm355, %v874, 0
    %881 = vmatpush.xpose.msra.mxu0 0.0
    %882 = vmatpush.xpose.msra.mxu0 0.0
    %883 = vmatpush.xpose.msra.mxu0 0.0
    %884 = vmatpush.xpose.msra.mxu0 0.0
    %885 = vmatpush.xpose.msra.mxu0 0.0
    %886 = vmatpush.xpose.msra.mxu0 0.0
    %887 = vmatpush.xpose.msra.mxu0 0.0
    %888 = vmatpush.xpose.msra.mxu0 0.0
    %889 = vmatpush.xpose.msra.mxu0 0.0
    %890 = vmatpush.xpose.msra.mxu0 0.0
    %891 = vmatpush.xpose.msra.mxu0 0.0
    %892 = vmatpush.xpose.msra.mxu0 0.0
    %893 = vmatpush.xpose.msra.mxu0 0.0
    %894 = vmatpush.xpose.msra.mxu0 0.0
    %895 = vmatpush.xpose.msra.mxu0 %v879
    %896 = vmatpush.xpose.msra.mxu0 %v877
    %897 = vmatmul.f32.gmra.mxu0 %v875
    %v898 = vpop.f32.mrf.mxu0
    %v899 = vadd.f32 0.0, %v898
    %900 = vdwg.mxu0
    %v901 = vsel %vm385, %v899, -inf
    %902 = vmax.xlane.f32.xlu0 %v901
    %v903 = vpop.xlane.xlu0 %902
    %v904 = vsub.f32 %v899, %v903
    %v905 = vmul.f32 %v904, 1.442695
    %v906 = vpow.pop %v905
    %v907 = vsel %vm385, %v906, 0.0
    %908 = vadd.xlane.f32.xlu0 %v907
    %v909 = vpop.xlane.xlu0 %908
    %v910 = vrcp.pop %v909
    %v911 = vmul.f32 %v909, %v910
    %v912 = vsub.f32 1.0, %v911
    %v913 = vmul.f32 %v910, %v912
    %v914 = vadd.f32 %v910, %v913
    %vm915 = vweird.f32 %v909
    %vm916 = vweird.f32 %v910
    %vm917 = vmor %vm915, %vm916
    %v918 = vsel %vm917, %v910, %v914
    %v919 = vand.u32 2147483647, %v909
    %vm920 = vcmp.eq.f32.partialorder %v919, 8.507059e+37
    %v921 = vand.u32 %v909, 2147483648
    %v922 = vor.u32 1.1754944e-38, %v921
    %v923 = vsel %vm920, %v922, %v918
    %v924 = vmul.f32 %v906, %v923
    %925 = vrot.lane.b32.xlu0 %v338, 112
    %v926 = vpop.permute.xlu0 %925
    %927 = vrot.lane.b32.xlu0 %v341, 112
    %v928 = vpop.permute.xlu0 %927
    %v932 = vsel %vm385, %v924, 0
    %934 = vmatpush.msra.mxu0 0.0
    %935 = vmatpush.msra.mxu0 0.0
    %936 = vmatpush.msra.mxu0 0.0
    %937 = vmatpush.msra.mxu0 0.0
    %938 = vmatpush.msra.mxu0 0.0
    %939 = vmatpush.msra.mxu0 0.0
    %940 = vmatpush.msra.mxu0 0.0
    %941 = vmatpush.msra.mxu0 0.0
    %942 = vmatpush.msra.mxu0 0.0
    %943 = vmatpush.msra.mxu0 0.0
    %944 = vmatpush.msra.mxu0 0.0
    %945 = vmatpush.msra.mxu0 0.0
    %946 = vmatpush.msra.mxu0 0.0
    %947 = vmatpush.msra.mxu0 0.0
    %948 = vmatpush.msra.mxu0 %v928
    %949 = vmatpush.msra.mxu0 %v926
    %950 = vmatmul.f32.gmra.mxu0 %v932
    %v951 = vpop.f32.mrf.mxu0
    %v952 = vadd.f32 0.0, %v951
    %953 = vdwg.mxu0
    %954 = vrot.lane.b32.xlu0 %v221, 104
    %v955 = vpop.permute.xlu0 %954
    %956 = vrot.lane.b32.xlu0 %v281, 104
    %v957 = vpop.permute.xlu0 %956
    %958 = vrot.lane.b32.xlu0 %v284, 104
    %v959 = vpop.permute.xlu0 %958
    %v960 = vsel %vm355, %v955, 0
    %v962 = vsel %vm355, %v957, 0
    %v964 = vsel %vm355, %v959, 0
    %966 = vmatpush.xpose.msra.mxu0 0.0
    %967 = vmatpush.xpose.msra.mxu0 0.0
    %968 = vmatpush.xpose.msra.mxu0 0.0
    %969 = vmatpush.xpose.msra.mxu0 0.0
    %970 = vmatpush.xpose.msra.mxu0 0.0
    %971 = vmatpush.xpose.msra.mxu0 0.0
    %972 = vmatpush.xpose.msra.mxu0 0.0
    %973 = vmatpush.xpose.msra.mxu0 0.0
    %974 = vmatpush.xpose.msra.mxu0 0.0
    %975 = vmatpush.xpose.msra.mxu0 0.0
    %976 = vmatpush.xpose.msra.mxu0 0.0
    %977 = vmatpush.xpose.msra.mxu0 0.0
    %978 = vmatpush.xpose.msra.mxu0 0.0
    %979 = vmatpush.xpose.msra.mxu0 0.0
    %980 = vmatpush.xpose.msra.mxu0 %v964
    %981 = vmatpush.xpose.msra.mxu0 %v962
    %982 = vmatmul.f32.gmra.mxu0 %v960
    %v983 = vpop.f32.mrf.mxu0
    %v984 = vadd.f32 0.0, %v983
    %985 = vdwg.mxu0
    %v986 = vsel %vm385, %v984, -inf
    %987 = vmax.xlane.f32.xlu0 %v986
    %v988 = vpop.xlane.xlu0 %987
    %v989 = vsub.f32 %v984, %v988
    %v990 = vmul.f32 %v989, 1.442695
    %v991 = vpow.pop %v990
    %v992 = vsel %vm385, %v991, 0.0
    %993 = vadd.xlane.f32.xlu0 %v992
    %v994 = vpop.xlane.xlu0 %993
    %v995 = vrcp.pop %v994
    %v996 = vmul.f32 %v994, %v995
    %v997 = vsub.f32 1.0, %v996
    %v998 = vmul.f32 %v995, %v997
    %v999 = vadd.f32 %v995, %v998
    %vm1000 = vweird.f32 %v994
    %vm1001 = vweird.f32 %v995
    %vm1002 = vmor %vm1000, %vm1001
    %v1003 = vsel %vm1002, %v995, %v999
    %v1004 = vand.u32 2147483647, %v994
    %vm1005 = vcmp.eq.f32.partialorder %v1004, 8.507059e+37
    %v1006 = vand.u32 %v994, 2147483648
    %v1007 = vor.u32 1.1754944e-38, %v1006
    %v1008 = vsel %vm1005, %v1007, %v1003
    %v1009 = vmul.f32 %v991, %v1008
    %1010 = vrot.lane.b32.xlu0 %v338, 104
    %v1011 = vpop.permute.xlu0 %1010
    %1012 = vrot.lane.b32.xlu0 %v341, 104
    %v1013 = vpop.permute.xlu0 %1012
    %v1017 = vsel %vm385, %v1009, 0
    %1019 = vmatpush.msra.mxu0 0.0
    %1020 = vmatpush.msra.mxu0 0.0
    %1021 = vmatpush.msra.mxu0 0.0
    %1022 = vmatpush.msra.mxu0 0.0
    %1023 = vmatpush.msra.mxu0 0.0
    %1024 = vmatpush.msra.mxu0 0.0
    %1025 = vmatpush.msra.mxu0 0.0
    %1026 = vmatpush.msra.mxu0 0.0
    %1027 = vmatpush.msra.mxu0 0.0
    %1028 = vmatpush.msra.mxu0 0.0
    %1029 = vmatpush.msra.mxu0 0.0
    %1030 = vmatpush.msra.mxu0 0.0
    %1031 = vmatpush.msra.mxu0 0.0
    %1032 = vmatpush.msra.mxu0 0.0
    %1033 = vmatpush.msra.mxu0 %v1013
    %1034 = vmatpush.msra.mxu0 %v1011
    %1035 = vmatmul.f32.gmra.mxu0 %v1017
    %v1036 = vpop.f32.mrf.mxu0
    %v1037 = vadd.f32 0.0, %v1036
    %1038 = vdwg.mxu0
    %1040 = vrot.lane.b32.xlu0 %v867, 8
    %v1041 = vpop.permute.xlu0 %1040
    %1044 = vrot.lane.b32.xlu0 %v952, 16
    %v1045 = vpop.permute.xlu0 %1044
    %1048 = vrot.lane.b32.xlu0 %v1037, 24
    %v1049 = vpop.permute.xlu0 %1048
    %v1051 = vsel %vm355, %v780, %v1041
    %v1052 = vsel %vm385, %v1051, %v1045
    %v1053 = vsel %vm704, %v1052, %v1049
    %v1055 = vsel %vm355, %v224, 0
    %v1058 = vsel %vm355, %v287, 0
    %v1061 = vsel %vm355, %v290, 0
    %1063 = vmatpush.xpose.msra.mxu0 0.0
    %1064 = vmatpush.xpose.msra.mxu0 0.0
    %1065 = vmatpush.xpose.msra.mxu0 0.0
    %1066 = vmatpush.xpose.msra.mxu0 0.0
    %1067 = vmatpush.xpose.msra.mxu0 0.0
    %1068 = vmatpush.xpose.msra.mxu0 0.0
    %1069 = vmatpush.xpose.msra.mxu0 0.0
    %1070 = vmatpush.xpose.msra.mxu0 0.0
    %1071 = vmatpush.xpose.msra.mxu0 0.0
    %1072 = vmatpush.xpose.msra.mxu0 0.0
    %1073 = vmatpush.xpose.msra.mxu0 0.0
    %1074 = vmatpush.xpose.msra.mxu0 0.0
    %1075 = vmatpush.xpose.msra.mxu0 0.0
    %1076 = vmatpush.xpose.msra.mxu0 0.0
    %1077 = vmatpush.xpose.msra.mxu0 %v1061
    %1078 = vmatpush.xpose.msra.mxu0 %v1058
    %1079 = vmatmul.f32.gmra.mxu0 %v1055
    %v1080 = vpop.f32.mrf.mxu0
    %v1081 = vadd.f32 0.0, %v1080
    %1082 = vdwg.mxu0
    %v1083 = vsel %vm385, %v1081, -inf
    %1084 = vmax.xlane.f32.xlu0 %v1083
    %v1085 = vpop.xlane.xlu0 %1084
    %v1086 = vsub.f32 %v1081, %v1085
    %v1087 = vmul.f32 %v1086, 1.442695
    %v1088 = vpow.pop %v1087
    %v1089 = vsel %vm385, %v1088, 0.0
    %1090 = vadd.xlane.f32.xlu0 %v1089
    %v1091 = vpop.xlane.xlu0 %1090
    %v1092 = vrcp.pop %v1091
    %v1093 = vmul.f32 %v1091, %v1092
    %v1094 = vsub.f32 1.0, %v1093
    %v1095 = vmul.f32 %v1092, %v1094
    %v1096 = vadd.f32 %v1092, %v1095
    %vm1097 = vweird.f32 %v1091
    %vm1098 = vweird.f32 %v1092
    %vm1099 = vmor %vm1097, %vm1098
    %v1100 = vsel %vm1099, %v1092, %v1096
    %v1101 = vand.u32 2147483647, %v1091
    %vm1102 = vcmp.eq.f32.partialorder %v1101, 8.507059e+37
    %v1103 = vand.u32 %v1091, 2147483648
    %v1104 = vor.u32 1.1754944e-38, %v1103
    %v1105 = vsel %vm1102, %v1104, %v1100
    %v1106 = vmul.f32 %v1088, %v1105
    %v1108 = vsel %vm385, %v1106, 0
    %1110 = vmatpush.msra.mxu0 0.0
    %1111 = vmatpush.msra.mxu0 0.0
    %1112 = vmatpush.msra.mxu0 0.0
    %1113 = vmatpush.msra.mxu0 0.0
    %1114 = vmatpush.msra.mxu0 0.0
    %1115 = vmatpush.msra.mxu0 0.0
    %1116 = vmatpush.msra.mxu0 0.0
    %1117 = vmatpush.msra.mxu0 0.0
    %1118 = vmatpush.msra.mxu0 0.0
    %1119 = vmatpush.msra.mxu0 0.0
    %1120 = vmatpush.msra.mxu0 0.0
    %1121 = vmatpush.msra.mxu0 0.0
    %1122 = vmatpush.msra.mxu0 0.0
    %1123 = vmatpush.msra.mxu0 0.0
    %1124 = vmatpush.msra.mxu0 %v347
    %1125 = vmatpush.msra.mxu0 %v344
    %1126 = vmatmul.f32.gmra.mxu0 %v1108
    %v1127 = vpop.f32.mrf.mxu0
    %v1128 = vadd.f32 0.0, %v1127
    %1129 = vdwg.mxu0
    %1130 = vrot.lane.b32.xlu0 %v224, 120
    %v1131 = vpop.permute.xlu0 %1130
    %1132 = vrot.lane.b32.xlu0 %v287, 120
    %v1133 = vpop.permute.xlu0 %1132
    %1134 = vrot.lane.b32.xlu0 %v290, 120
    %v1135 = vpop.permute.xlu0 %1134
    %v1136 = vsel %vm355, %v1131, 0
    %v1138 = vsel %vm355, %v1133, 0
    %v1140 = vsel %vm355, %v1135, 0
    %1142 = vmatpush.xpose.msra.mxu0 0.0
    %1143 = vmatpush.xpose.msra.mxu0 0.0
    %1144 = vmatpush.xpose.msra.mxu0 0.0
    %1145 = vmatpush.xpose.msra.mxu0 0.0
    %1146 = vmatpush.xpose.msra.mxu0 0.0
    %1147 = vmatpush.xpose.msra.mxu0 0.0
    %1148 = vmatpush.xpose.msra.mxu0 0.0
    %1149 = vmatpush.xpose.msra.mxu0 0.0
    %1150 = vmatpush.xpose.msra.mxu0 0.0
    %1151 = vmatpush.xpose.msra.mxu0 0.0
    %1152 = vmatpush.xpose.msra.mxu0 0.0
    %1153 = vmatpush.xpose.msra.mxu0 0.0
    %1154 = vmatpush.xpose.msra.mxu0 0.0
    %1155 = vmatpush.xpose.msra.mxu0 0.0
    %1156 = vmatpush.xpose.msra.mxu0 %v1140
    %1157 = vmatpush.xpose.msra.mxu0 %v1138
    %1158 = vmatmul.f32.gmra.mxu0 %v1136
    %v1159 = vpop.f32.mrf.mxu0
    %v1160 = vadd.f32 0.0, %v1159
    %1161 = vdwg.mxu0
    %v1162 = vsel %vm385, %v1160, -inf
    %1163 = vmax.xlane.f32.xlu0 %v1162
    %v1164 = vpop.xlane.xlu0 %1163
    %v1165 = vsub.f32 %v1160, %v1164
    %v1166 = vmul.f32 %v1165, 1.442695
    %v1167 = vpow.pop %v1166
    %v1168 = vsel %vm385, %v1167, 0.0
    %1169 = vadd.xlane.f32.xlu0 %v1168
    %v1170 = vpop.xlane.xlu0 %1169
    %v1171 = vrcp.pop %v1170
    %v1172 = vmul.f32 %v1170, %v1171
    %v1173 = vsub.f32 1.0, %v1172
    %v1174 = vmul.f32 %v1171, %v1173
    %v1175 = vadd.f32 %v1171, %v1174
    %vm1176 = vweird.f32 %v1170
    %vm1177 = vweird.f32 %v1171
    %vm1178 = vmor %vm1176, %vm1177
    %v1179 = vsel %vm1178, %v1171, %v1175
    %v1180 = vand.u32 2147483647, %v1170
    %vm1181 = vcmp.eq.f32.partialorder %v1180, 8.507059e+37
    %v1182 = vand.u32 %v1170, 2147483648
    %v1183 = vor.u32 1.1754944e-38, %v1182
    %v1184 = vsel %vm1181, %v1183, %v1179
    %v1185 = vmul.f32 %v1167, %v1184
    %1188 = vrot.lane.b32.xlu0 %v344, 120
    %v1189 = vpop.permute.xlu0 %1188
    %1190 = vrot.lane.b32.xlu0 %v347, 120
    %v1191 = vpop.permute.xlu0 %1190
    %v1195 = vsel %vm385, %v1185, 0
    %1197 = vmatpush.msra.mxu0 0.0
    %1198 = vmatpush.msra.mxu0 0.0
    %1199 = vmatpush.msra.mxu0 0.0
    %1200 = vmatpush.msra.mxu0 0.0
    %1201 = vmatpush.msra.mxu0 0.0
    %1202 = vmatpush.msra.mxu0 0.0
    %1203 = vmatpush.msra.mxu0 0.0
    %1204 = vmatpush.msra.mxu0 0.0
    %1205 = vmatpush.msra.mxu0 0.0
    %1206 = vmatpush.msra.mxu0 0.0
    %1207 = vmatpush.msra.mxu0 0.0
    %1208 = vmatpush.msra.mxu0 0.0
    %1209 = vmatpush.msra.mxu0 0.0
    %1210 = vmatpush.msra.mxu0 0.0
    %1211 = vmatpush.msra.mxu0 %v1191
    %1212 = vmatpush.msra.mxu0 %v1189
    %1213 = vmatmul.f32.gmra.mxu0 %v1195
    %v1214 = vpop.f32.mrf.mxu0
    %v1215 = vadd.f32 0.0, %v1214
    %1216 = vdwg.mxu0
    %1217 = vrot.lane.b32.xlu0 %v224, 112
    %v1218 = vpop.permute.xlu0 %1217
    %1219 = vrot.lane.b32.xlu0 %v287, 112
    %v1220 = vpop.permute.xlu0 %1219
    %1221 = vrot.lane.b32.xlu0 %v290, 112
    %v1222 = vpop.permute.xlu0 %1221
    %v1223 = vsel %vm355, %v1218, 0
    %v1225 = vsel %vm355, %v1220, 0
    %v1227 = vsel %vm355, %v1222, 0
    %1229 = vmatpush.xpose.msra.mxu0 0.0
    %1230 = vmatpush.xpose.msra.mxu0 0.0
    %1231 = vmatpush.xpose.msra.mxu0 0.0
    %1232 = vmatpush.xpose.msra.mxu0 0.0
    %1233 = vmatpush.xpose.msra.mxu0 0.0
    %1234 = vmatpush.xpose.msra.mxu0 0.0
    %1235 = vmatpush.xpose.msra.mxu0 0.0
    %1236 = vmatpush.xpose.msra.mxu0 0.0
    %1237 = vmatpush.xpose.msra.mxu0 0.0
    %1238 = vmatpush.xpose.msra.mxu0 0.0
    %1239 = vmatpush.xpose.msra.mxu0 0.0
    %1240 = vmatpush.xpose.msra.mxu0 0.0
    %1241 = vmatpush.xpose.msra.mxu0 0.0
    %1242 = vmatpush.xpose.msra.mxu0 0.0
    %1243 = vmatpush.xpose.msra.mxu0 %v1227
    %1244 = vmatpush.xpose.msra.mxu0 %v1225
    %1245 = vmatmul.f32.gmra.mxu0 %v1223
    %v1246 = vpop.f32.mrf.mxu0
    %v1247 = vadd.f32 0.0, %v1246
    %1248 = vdwg.mxu0
    %v1249 = vsel %vm385, %v1247, -inf
    %1250 = vmax.xlane.f32.xlu0 %v1249
    %v1251 = vpop.xlane.xlu0 %1250
    %v1252 = vsub.f32 %v1247, %v1251
    %v1253 = vmul.f32 %v1252, 1.442695
    %v1254 = vpow.pop %v1253
    %v1255 = vsel %vm385, %v1254, 0.0
    %1256 = vadd.xlane.f32.xlu0 %v1255
    %v1257 = vpop.xlane.xlu0 %1256
    %v1258 = vrcp.pop %v1257
    %v1259 = vmul.f32 %v1257, %v1258
    %v1260 = vsub.f32 1.0, %v1259
    %v1261 = vmul.f32 %v1258, %v1260
    %v1262 = vadd.f32 %v1258, %v1261
    %vm1263 = vweird.f32 %v1257
    %vm1264 = vweird.f32 %v1258
    %vm1265 = vmor %vm1263, %vm1264
    %v1266 = vsel %vm1265, %v1258, %v1262
    %v1267 = vand.u32 2147483647, %v1257
    %vm1268 = vcmp.eq.f32.partialorder %v1267, 8.507059e+37
    %v1269 = vand.u32 %v1257, 2147483648
    %v1270 = vor.u32 1.1754944e-38, %v1269
    %v1271 = vsel %vm1268, %v1270, %v1266
    %v1272 = vmul.f32 %v1254, %v1271
    %1273 = vrot.lane.b32.xlu0 %v344, 112
    %v1274 = vpop.permute.xlu0 %1273
    %1275 = vrot.lane.b32.xlu0 %v347, 112
    %v1276 = vpop.permute.xlu0 %1275
    %v1280 = vsel %vm385, %v1272, 0
    %1282 = vmatpush.msra.mxu0 0.0
    %1283 = vmatpush.msra.mxu0 0.0
    %1284 = vmatpush.msra.mxu0 0.0
    %1285 = vmatpush.msra.mxu0 0.0
    %1286 = vmatpush.msra.mxu0 0.0
    %1287 = vmatpush.msra.mxu0 0.0
    %1288 = vmatpush.msra.mxu0 0.0
    %1289 = vmatpush.msra.mxu0 0.0
    %1290 = vmatpush.msra.mxu0 0.0
    %1291 = vmatpush.msra.mxu0 0.0
    %1292 = vmatpush.msra.mxu0 0.0
    %1293 = vmatpush.msra.mxu0 0.0
    %1294 = vmatpush.msra.mxu0 0.0
    %1295 = vmatpush.msra.mxu0 0.0
    %1296 = vmatpush.msra.mxu0 %v1276
    %1297 = vmatpush.msra.mxu0 %v1274
    %1298 = vmatmul.f32.gmra.mxu0 %v1280
    %v1299 = vpop.f32.mrf.mxu0
    %v1300 = vadd.f32 0.0, %v1299
    %1301 = vdwg.mxu0
    %1302 = vrot.lane.b32.xlu0 %v224, 104
    %v1303 = vpop.permute.xlu0 %1302
    %1304 = vrot.lane.b32.xlu0 %v287, 104
    %v1305 = vpop.permute.xlu0 %1304
    %1306 = vrot.lane.b32.xlu0 %v290, 104
    %v1307 = vpop.permute.xlu0 %1306
    %v1308 = vsel %vm355, %v1303, 0
    %v1310 = vsel %vm355, %v1305, 0
    %v1312 = vsel %vm355, %v1307, 0
    %1314 = vmatpush.xpose.msra.mxu0 0.0
    %1315 = vmatpush.xpose.msra.mxu0 0.0
    %1316 = vmatpush.xpose.msra.mxu0 0.0
    %1317 = vmatpush.xpose.msra.mxu0 0.0
    %1318 = vmatpush.xpose.msra.mxu0 0.0
    %1319 = vmatpush.xpose.msra.mxu0 0.0
    %1320 = vmatpush.xpose.msra.mxu0 0.0
    %1321 = vmatpush.xpose.msra.mxu0 0.0
    %1322 = vmatpush.xpose.msra.mxu0 0.0
    %1323 = vmatpush.xpose.msra.mxu0 0.0
    %1324 = vmatpush.xpose.msra.mxu0 0.0
    %1325 = vmatpush.xpose.msra.mxu0 0.0
    %1326 = vmatpush.xpose.msra.mxu0 0.0
    %1327 = vmatpush.xpose.msra.mxu0 0.0
    %1328 = vmatpush.xpose.msra.mxu0 %v1312
    %1329 = vmatpush.xpose.msra.mxu0 %v1310
    %1330 = vmatmul.f32.gmra.mxu0 %v1308
    %v1331 = vpop.f32.mrf.mxu0
    %v1332 = vadd.f32 0.0, %v1331
    %1333 = vdwg.mxu0
    %v1334 = vsel %vm385, %v1332, -inf
    %1335 = vmax.xlane.f32.xlu0 %v1334
    %v1336 = vpop.xlane.xlu0 %1335
    %v1337 = vsub.f32 %v1332, %v1336
    %v1338 = vmul.f32 %v1337, 1.442695
    %v1339 = vpow.pop %v1338
    %v1340 = vsel %vm385, %v1339, 0.0
    %1341 = vadd.xlane.f32.xlu0 %v1340
    %v1342 = vpop.xlane.xlu0 %1341
    %v1343 = vrcp.pop %v1342
    %v1344 = vmul.f32 %v1342, %v1343
    %v1345 = vsub.f32 1.0, %v1344
    %v1346 = vmul.f32 %v1343, %v1345
    %v1347 = vadd.f32 %v1343, %v1346
    %vm1348 = vweird.f32 %v1342
    %vm1349 = vweird.f32 %v1343
    %vm1350 = vmor %vm1348, %vm1349
    %v1351 = vsel %vm1350, %v1343, %v1347
    %v1352 = vand.u32 2147483647, %v1342
    %vm1353 = vcmp.eq.f32.partialorder %v1352, 8.507059e+37
    %v1354 = vand.u32 %v1342, 2147483648
    %v1355 = vor.u32 1.1754944e-38, %v1354
    %v1356 = vsel %vm1353, %v1355, %v1351
    %v1357 = vmul.f32 %v1339, %v1356
    %1358 = vrot.lane.b32.xlu0 %v344, 104
    %v1359 = vpop.permute.xlu0 %1358
    %1360 = vrot.lane.b32.xlu0 %v347, 104
    %v1361 = vpop.permute.xlu0 %1360
    %v1365 = vsel %vm385, %v1357, 0
    %1367 = vmatpush.msra.mxu0 0.0
    %1368 = vmatpush.msra.mxu0 0.0
    %1369 = vmatpush.msra.mxu0 0.0
    %1370 = vmatpush.msra.mxu0 0.0
    %1371 = vmatpush.msra.mxu0 0.0
    %1372 = vmatpush.msra.mxu0 0.0
    %1373 = vmatpush.msra.mxu0 0.0
    %1374 = vmatpush.msra.mxu0 0.0
    %1375 = vmatpush.msra.mxu0 0.0
    %1376 = vmatpush.msra.mxu0 0.0
    %1377 = vmatpush.msra.mxu0 0.0
    %1378 = vmatpush.msra.mxu0 0.0
    %1379 = vmatpush.msra.mxu0 0.0
    %1380 = vmatpush.msra.mxu0 0.0
    %1381 = vmatpush.msra.mxu0 %v1361
    %1382 = vmatpush.msra.mxu0 %v1359
    %1383 = vmatmul.f32.gmra.mxu0 %v1365
    %v1384 = vpop.f32.mrf.mxu0
    %v1385 = vadd.f32 0.0, %v1384
    %1386 = vdwg.mxu0
    %1388 = vrot.lane.b32.xlu0 %v1215, 8
    %v1389 = vpop.permute.xlu0 %1388
    %1392 = vrot.lane.b32.xlu0 %v1300, 16
    %v1393 = vpop.permute.xlu0 %1392
    %1396 = vrot.lane.b32.xlu0 %v1385, 24
    %v1397 = vpop.permute.xlu0 %1396
    %v1399 = vsel %vm355, %v1128, %v1389
    %v1400 = vsel %vm385, %v1399, %v1393
    %v1401 = vsel %vm704, %v1400, %v1397
    %v1403 = vsel %vm355, %v227, 0
    %v1406 = vsel %vm355, %v293, 0
    %v1409 = vsel %vm355, %v296, 0
    %1411 = vmatpush.xpose.msra.mxu0 0.0
    %1412 = vmatpush.xpose.msra.mxu0 0.0
    %1413 = vmatpush.xpose.msra.mxu0 0.0
    %1414 = vmatpush.xpose.msra.mxu0 0.0
    %1415 = vmatpush.xpose.msra.mxu0 0.0
    %1416 = vmatpush.xpose.msra.mxu0 0.0
    %1417 = vmatpush.xpose.msra.mxu0 0.0
    %1418 = vmatpush.xpose.msra.mxu0 0.0
    %1419 = vmatpush.xpose.msra.mxu0 0.0
    %1420 = vmatpush.xpose.msra.mxu0 0.0
    %1421 = vmatpush.xpose.msra.mxu0 0.0
    %1422 = vmatpush.xpose.msra.mxu0 0.0
    %1423 = vmatpush.xpose.msra.mxu0 0.0
    %1424 = vmatpush.xpose.msra.mxu0 0.0
    %1425 = vmatpush.xpose.msra.mxu0 %v1409
    %1426 = vmatpush.xpose.msra.mxu0 %v1406
    %1427 = vmatmul.f32.gmra.mxu0 %v1403
    %v1428 = vpop.f32.mrf.mxu0
    %v1429 = vadd.f32 0.0, %v1428
    %1430 = vdwg.mxu0
    %v1431 = vsel %vm385, %v1429, -inf
    %1432 = vmax.xlane.f32.xlu0 %v1431
    %v1433 = vpop.xlane.xlu0 %1432
    %v1434 = vsub.f32 %v1429, %v1433
    %v1435 = vmul.f32 %v1434, 1.442695
    %v1436 = vpow.pop %v1435
    %v1437 = vsel %vm385, %v1436, 0.0
    %1438 = vadd.xlane.f32.xlu0 %v1437
    %v1439 = vpop.xlane.xlu0 %1438
    %v1440 = vrcp.pop %v1439
    %v1441 = vmul.f32 %v1439, %v1440
    %v1442 = vsub.f32 1.0, %v1441
    %v1443 = vmul.f32 %v1440, %v1442
    %v1444 = vadd.f32 %v1440, %v1443
    %vm1445 = vweird.f32 %v1439
    %vm1446 = vweird.f32 %v1440
    %vm1447 = vmor %vm1445, %vm1446
    %v1448 = vsel %vm1447, %v1440, %v1444
    %v1449 = vand.u32 2147483647, %v1439
    %vm1450 = vcmp.eq.f32.partialorder %v1449, 8.507059e+37
    %v1451 = vand.u32 %v1439, 2147483648
    %v1452 = vor.u32 1.1754944e-38, %v1451
    %v1453 = vsel %vm1450, %v1452, %v1448
    %v1454 = vmul.f32 %v1436, %v1453
    %v1456 = vsel %vm385, %v1454, 0
    %1458 = vmatpush.msra.mxu0 0.0
    %1459 = vmatpush.msra.mxu0 0.0
    %1460 = vmatpush.msra.mxu0 0.0
    %1461 = vmatpush.msra.mxu0 0.0
    %1462 = vmatpush.msra.mxu0 0.0
    %1463 = vmatpush.msra.mxu0 0.0
    %1464 = vmatpush.msra.mxu0 0.0
    %1465 = vmatpush.msra.mxu0 0.0
    %1466 = vmatpush.msra.mxu0 0.0
    %1467 = vmatpush.msra.mxu0 0.0
    %1468 = vmatpush.msra.mxu0 0.0
    %1469 = vmatpush.msra.mxu0 0.0
    %1470 = vmatpush.msra.mxu0 0.0
    %1471 = vmatpush.msra.mxu0 0.0
    %1472 = vmatpush.msra.mxu0 %v353
    %1473 = vmatpush.msra.mxu0 %v350
    %1474 = vmatmul.f32.gmra.mxu0 %v1456
    %v1475 = vpop.f32.mrf.mxu0
    %v1476 = vadd.f32 0.0, %v1475
    %1477 = vdwg.mxu0
    %1478 = vrot.lane.b32.xlu0 %v227, 120
    %v1479 = vpop.permute.xlu0 %1478
    %1480 = vrot.lane.b32.xlu0 %v293, 120
    %v1481 = vpop.permute.xlu0 %1480
    %1482 = vrot.lane.b32.xlu0 %v296, 120
    %v1483 = vpop.permute.xlu0 %1482
    %v1484 = vsel %vm355, %v1479, 0
    %v1486 = vsel %vm355, %v1481, 0
    %v1488 = vsel %vm355, %v1483, 0
    %1490 = vmatpush.xpose.msra.mxu0 0.0
    %1491 = vmatpush.xpose.msra.mxu0 0.0
    %1492 = vmatpush.xpose.msra.mxu0 0.0
    %1493 = vmatpush.xpose.msra.mxu0 0.0
    %1494 = vmatpush.xpose.msra.mxu0 0.0
    %1495 = vmatpush.xpose.msra.mxu0 0.0
    %1496 = vmatpush.xpose.msra.mxu0 0.0
    %1497 = vmatpush.xpose.msra.mxu0 0.0
    %1498 = vmatpush.xpose.msra.mxu0 0.0
    %1499 = vmatpush.xpose.msra.mxu0 0.0
    %1500 = vmatpush.xpose.msra.mxu0 0.0
    %1501 = vmatpush.xpose.msra.mxu0 0.0
    %1502 = vmatpush.xpose.msra.mxu0 0.0
    %1503 = vmatpush.xpose.msra.mxu0 0.0
    %1504 = vmatpush.xpose.msra.mxu0 %v1488
    %1505 = vmatpush.xpose.msra.mxu0 %v1486
    %1506 = vmatmul.f32.gmra.mxu0 %v1484
    %v1507 = vpop.f32.mrf.mxu0
    %v1508 = vadd.f32 0.0, %v1507
    %1509 = vdwg.mxu0
    %v1510 = vsel %vm385, %v1508, -inf
    %1511 = vmax.xlane.f32.xlu0 %v1510
    %v1512 = vpop.xlane.xlu0 %1511
    %v1513 = vsub.f32 %v1508, %v1512
    %v1514 = vmul.f32 %v1513, 1.442695
    %v1515 = vpow.pop %v1514
    %v1516 = vsel %vm385, %v1515, 0.0
    %1517 = vadd.xlane.f32.xlu0 %v1516
    %v1518 = vpop.xlane.xlu0 %1517
    %v1519 = vrcp.pop %v1518
    %v1520 = vmul.f32 %v1518, %v1519
    %v1521 = vsub.f32 1.0, %v1520
    %v1522 = vmul.f32 %v1519, %v1521
    %v1523 = vadd.f32 %v1519, %v1522
    %vm1524 = vweird.f32 %v1518
    %vm1525 = vweird.f32 %v1519
    %vm1526 = vmor %vm1524, %vm1525
    %v1527 = vsel %vm1526, %v1519, %v1523
    %v1528 = vand.u32 2147483647, %v1518
    %vm1529 = vcmp.eq.f32.partialorder %v1528, 8.507059e+37
    %v1530 = vand.u32 %v1518, 2147483648
    %v1531 = vor.u32 1.1754944e-38, %v1530
    %v1532 = vsel %vm1529, %v1531, %v1527
    %v1533 = vmul.f32 %v1515, %v1532
    %1536 = vrot.lane.b32.xlu0 %v350, 120
    %v1537 = vpop.permute.xlu0 %1536
    %1538 = vrot.lane.b32.xlu0 %v353, 120
    %v1539 = vpop.permute.xlu0 %1538
    %v1543 = vsel %vm385, %v1533, 0
    %1545 = vmatpush.msra.mxu0 0.0
    %1546 = vmatpush.msra.mxu0 0.0
    %1547 = vmatpush.msra.mxu0 0.0
    %1548 = vmatpush.msra.mxu0 0.0
    %1549 = vmatpush.msra.mxu0 0.0
    %1550 = vmatpush.msra.mxu0 0.0
    %1551 = vmatpush.msra.mxu0 0.0
    %1552 = vmatpush.msra.mxu0 0.0
    %1553 = vmatpush.msra.mxu0 0.0
    %1554 = vmatpush.msra.mxu0 0.0
    %1555 = vmatpush.msra.mxu0 0.0
    %1556 = vmatpush.msra.mxu0 0.0
    %1557 = vmatpush.msra.mxu0 0.0
    %1558 = vmatpush.msra.mxu0 0.0
    %1559 = vmatpush.msra.mxu0 %v1539
    %1560 = vmatpush.msra.mxu0 %v1537
    %1561 = vmatmul.f32.gmra.mxu0 %v1543
    %v1562 = vpop.f32.mrf.mxu0
    %v1563 = vadd.f32 0.0, %v1562
    %1564 = vdwg.mxu0
    %1565 = vrot.lane.b32.xlu0 %v227, 112
    %v1566 = vpop.permute.xlu0 %1565
    %1567 = vrot.lane.b32.xlu0 %v293, 112
    %v1568 = vpop.permute.xlu0 %1567
    %1569 = vrot.lane.b32.xlu0 %v296, 112
    %v1570 = vpop.permute.xlu0 %1569
    %v1571 = vsel %vm355, %v1566, 0
    %v1573 = vsel %vm355, %v1568, 0
    %v1575 = vsel %vm355, %v1570, 0
    %1577 = vmatpush.xpose.msra.mxu0 0.0
    %1578 = vmatpush.xpose.msra.mxu0 0.0
    %1579 = vmatpush.xpose.msra.mxu0 0.0
    %1580 = vmatpush.xpose.msra.mxu0 0.0
    %1581 = vmatpush.xpose.msra.mxu0 0.0
    %1582 = vmatpush.xpose.msra.mxu0 0.0
    %1583 = vmatpush.xpose.msra.mxu0 0.0
    %1584 = vmatpush.xpose.msra.mxu0 0.0
    %1585 = vmatpush.xpose.msra.mxu0 0.0
    %1586 = vmatpush.xpose.msra.mxu0 0.0
    %1587 = vmatpush.xpose.msra.mxu0 0.0
    %1588 = vmatpush.xpose.msra.mxu0 0.0
    %1589 = vmatpush.xpose.msra.mxu0 0.0
    %1590 = vmatpush.xpose.msra.mxu0 0.0
    %1591 = vmatpush.xpose.msra.mxu0 %v1575
    %1592 = vmatpush.xpose.msra.mxu0 %v1573
    %1593 = vmatmul.f32.gmra.mxu0 %v1571
    %v1594 = vpop.f32.mrf.mxu0
    %v1595 = vadd.f32 0.0, %v1594
    %1596 = vdwg.mxu0
    %v1597 = vsel %vm385, %v1595, -inf
    %1598 = vmax.xlane.f32.xlu0 %v1597
    %v1599 = vpop.xlane.xlu0 %1598
    %v1600 = vsub.f32 %v1595, %v1599
    %v1601 = vmul.f32 %v1600, 1.442695
    %v1602 = vpow.pop %v1601
    %v1603 = vsel %vm385, %v1602, 0.0
    %1604 = vadd.xlane.f32.xlu0 %v1603
    %v1605 = vpop.xlane.xlu0 %1604
    %v1606 = vrcp.pop %v1605
    %v1607 = vmul.f32 %v1605, %v1606
    %v1608 = vsub.f32 1.0, %v1607
    %v1609 = vmul.f32 %v1606, %v1608
    %v1610 = vadd.f32 %v1606, %v1609
    %vm1611 = vweird.f32 %v1605
    %vm1612 = vweird.f32 %v1606
    %vm1613 = vmor %vm1611, %vm1612
    %v1614 = vsel %vm1613, %v1606, %v1610
    %v1615 = vand.u32 2147483647, %v1605
    %vm1616 = vcmp.eq.f32.partialorder %v1615, 8.507059e+37
    %v1617 = vand.u32 %v1605, 2147483648
    %v1618 = vor.u32 1.1754944e-38, %v1617
    %v1619 = vsel %vm1616, %v1618, %v1614
    %v1620 = vmul.f32 %v1602, %v1619
    %1621 = vrot.lane.b32.xlu0 %v350, 112
    %v1622 = vpop.permute.xlu0 %1621
    %1623 = vrot.lane.b32.xlu0 %v353, 112
    %v1624 = vpop.permute.xlu0 %1623
    %v1628 = vsel %vm385, %v1620, 0
    %1630 = vmatpush.msra.mxu0 0.0
    %1631 = vmatpush.msra.mxu0 0.0
    %1632 = vmatpush.msra.mxu0 0.0
    %1633 = vmatpush.msra.mxu0 0.0
    %1634 = vmatpush.msra.mxu0 0.0
    %1635 = vmatpush.msra.mxu0 0.0
    %1636 = vmatpush.msra.mxu0 0.0
    %1637 = vmatpush.msra.mxu0 0.0
    %1638 = vmatpush.msra.mxu0 0.0
    %1639 = vmatpush.msra.mxu0 0.0
    %1640 = vmatpush.msra.mxu0 0.0
    %1641 = vmatpush.msra.mxu0 0.0
    %1642 = vmatpush.msra.mxu0 0.0
    %1643 = vmatpush.msra.mxu0 0.0
    %1644 = vmatpush.msra.mxu0 %v1624
    %1645 = vmatpush.msra.mxu0 %v1622
    %1646 = vmatmul.f32.gmra.mxu0 %v1628
    %v1647 = vpop.f32.mrf.mxu0
    %v1648 = vadd.f32 0.0, %v1647
    %1649 = vdwg.mxu0
    %1650 = vrot.lane.b32.xlu0 %v227, 104
    %v1651 = vpop.permute.xlu0 %1650
    %1652 = vrot.lane.b32.xlu0 %v293, 104
    %v1653 = vpop.permute.xlu0 %1652
    %1654 = vrot.lane.b32.xlu0 %v296, 104
    %v1655 = vpop.permute.xlu0 %1654
    %v1656 = vsel %vm355, %v1651, 0
    %v1658 = vsel %vm355, %v1653, 0
    %v1660 = vsel %vm355, %v1655, 0
    %1662 = vmatpush.xpose.msra.mxu0 0.0
    %1663 = vmatpush.xpose.msra.mxu0 0.0
    %1664 = vmatpush.xpose.msra.mxu0 0.0
    %1665 = vmatpush.xpose.msra.mxu0 0.0
    %1666 = vmatpush.xpose.msra.mxu0 0.0
    %1667 = vmatpush.xpose.msra.mxu0 0.0
    %1668 = vmatpush.xpose.msra.mxu0 0.0
    %1669 = vmatpush.xpose.msra.mxu0 0.0
    %1670 = vmatpush.xpose.msra.mxu0 0.0
    %1671 = vmatpush.xpose.msra.mxu0 0.0
    %1672 = vmatpush.xpose.msra.mxu0 0.0
    %1673 = vmatpush.xpose.msra.mxu0 0.0
    %1674 = vmatpush.xpose.msra.mxu0 0.0
    %1675 = vmatpush.xpose.msra.mxu0 0.0
    %1676 = vmatpush.xpose.msra.mxu0 %v1660
    %1677 = vmatpush.xpose.msra.mxu0 %v1658
    %1678 = vmatmul.f32.gmra.mxu0 %v1656
    %v1679 = vpop.f32.mrf.mxu0
    %v1680 = vadd.f32 0.0, %v1679
    %1681 = vdwg.mxu0
    %v1682 = vsel %vm385, %v1680, -inf
    %1683 = vmax.xlane.f32.xlu0 %v1682
    %v1684 = vpop.xlane.xlu0 %1683
    %v1685 = vsub.f32 %v1680, %v1684
    %v1686 = vmul.f32 %v1685, 1.442695
    %v1687 = vpow.pop %v1686
    %v1688 = vsel %vm385, %v1687, 0.0
    %1689 = vadd.xlane.f32.xlu0 %v1688
    %v1690 = vpop.xlane.xlu0 %1689
    %v1691 = vrcp.pop %v1690
    %v1692 = vmul.f32 %v1690, %v1691
    %v1693 = vsub.f32 1.0, %v1692
    %v1694 = vmul.f32 %v1691, %v1693
    %v1695 = vadd.f32 %v1691, %v1694
    %vm1696 = vweird.f32 %v1690
    %vm1697 = vweird.f32 %v1691
    %vm1698 = vmor %vm1696, %vm1697
    %v1699 = vsel %vm1698, %v1691, %v1695
    %v1700 = vand.u32 2147483647, %v1690
    %vm1701 = vcmp.eq.f32.partialorder %v1700, 8.507059e+37
    %v1702 = vand.u32 %v1690, 2147483648
    %v1703 = vor.u32 1.1754944e-38, %v1702
    %v1704 = vsel %vm1701, %v1703, %v1699
    %v1705 = vmul.f32 %v1687, %v1704
    %1706 = vrot.lane.b32.xlu0 %v350, 104
    %v1707 = vpop.permute.xlu0 %1706
    %1708 = vrot.lane.b32.xlu0 %v353, 104
    %v1709 = vpop.permute.xlu0 %1708
    %v1713 = vsel %vm385, %v1705, 0
    %1715 = vmatpush.msra.mxu0 0.0
    %1716 = vmatpush.msra.mxu0 0.0
    %1717 = vmatpush.msra.mxu0 0.0
    %1718 = vmatpush.msra.mxu0 0.0
    %1719 = vmatpush.msra.mxu0 0.0
    %1720 = vmatpush.msra.mxu0 0.0
    %1721 = vmatpush.msra.mxu0 0.0
    %1722 = vmatpush.msra.mxu0 0.0
    %1723 = vmatpush.msra.mxu0 0.0
    %1724 = vmatpush.msra.mxu0 0.0
    %1725 = vmatpush.msra.mxu0 0.0
    %1726 = vmatpush.msra.mxu0 0.0
    %1727 = vmatpush.msra.mxu0 0.0
    %1728 = vmatpush.msra.mxu0 0.0
    %1729 = vmatpush.msra.mxu0 %v1709
    %1730 = vmatpush.msra.mxu0 %v1707
    %1731 = vmatmul.f32.gmra.mxu0 %v1713
    %v1732 = vpop.f32.mrf.mxu0
    %v1733 = vadd.f32 0.0, %v1732
    %1734 = vdwg.mxu0
    %1736 = vrot.lane.b32.xlu0 %v1563, 8
    %v1737 = vpop.permute.xlu0 %1736
    %1740 = vrot.lane.b32.xlu0 %v1648, 16
    %v1741 = vpop.permute.xlu0 %1740
    %1744 = vrot.lane.b32.xlu0 %v1733, 24
    %v1745 = vpop.permute.xlu0 %1744
    %v1747 = vsel %vm355, %v1476, %v1737
    %v1748 = vsel %vm385, %v1747, %v1741
    %v1749 = vsel %vm704, %v1748, %v1745
    %v1750 = vld [vmem:[#allocation5] sm:$0xff]
    %v1751 = vld [vmem:[#allocation5 + $0x8] sm:$0xff]
    %v1752 = vld [vmem:[#allocation5 + $0x10] sm:$0xff]
    %v1753 = vld [vmem:[#allocation5 + $0x18] sm:$0xff]
    %v1754 = vld [vmem:[%s7] sm:$0x1]
    %v1756 = vperm.slane %v1754, 0
    %v1759 = vsel %vm64, %v705, 0
    %v1762 = vsel %vm64, %v1053, 0
    %v1765 = vsel %vm64, %v1401, 0
    %v1768 = vsel %vm64, %v1749, 0
    %1770 = vmatpush.msra.mxu0 0.0
    %1771 = vmatpush.msra.mxu0 0.0
    %1772 = vmatpush.msra.mxu0 0.0
    %1773 = vmatpush.msra.mxu0 0.0
    %1774 = vmatpush.msra.mxu0 0.0
    %1775 = vmatpush.msra.mxu0 0.0
    %1776 = vmatpush.msra.mxu0 0.0
    %1777 = vmatpush.msra.mxu0 0.0
    %1778 = vmatpush.msra.mxu0 0.0
    %1779 = vmatpush.msra.mxu0 0.0
    %1780 = vmatpush.msra.mxu0 0.0
    %1781 = vmatpush.msra.mxu0 0.0
    %1782 = vmatpush.msra.mxu0 %v1753
    %1783 = vmatpush.msra.mxu0 %v1752
    %1784 = vmatpush.msra.mxu0 %v1751
    %1785 = vmatpush.msra.mxu0 %v1750
    %1786 = vmatmul.f32.gmra.mxu0 %v1759
    %v1787 = vpop.f32.mrf.mxu0
    %v1788 = vadd.f32 %v1756, %v1787
    %1789 = vmatmul.f32.gmra.mxu0 %v1762
    %v1790 = vpop.f32.mrf.mxu0
    %v1791 = vadd.f32 %v1756, %v1790
    %1792 = vmatmul.f32.gmra.mxu0 %v1765
    %v1793 = vpop.f32.mrf.mxu0
    %v1794 = vadd.f32 %v1756, %v1793
    %1795 = vmatmul.f32.gmra.mxu0 %v1768
    %v1796 = vpop.f32.mrf.mxu0
    %v1797 = vadd.f32 %v1756, %v1796
    %1798 = vdwg.mxu0
    %1799 = vst [vmem:[#allocation7] sm:$0xff] %v1788
    %1800 = vst [vmem:[#allocation7 + $0x8] sm:$0xff] %v1791
    %1801 = vst [vmem:[#allocation7 + $0x10] sm:$0xff] %v1794
    %1802 = vst [vmem:[#allocation7 + $0x18] sm:$0xff] %v1797
    // Predicated region
    $region42: #{tpu_custom_call.1} parent=1 // pred_check
      _
    $region43: #{tpu_custom_call.1} parent=1 // pred_check_branch
      %1804 = sbr.rel (0) target = $region45
    $region44: #{tpu_custom_call.1} parent=1 // pred_region
      %1806 = vsyncadd [#allocation4], 0
      %s1807 = sshll.u32 [#allocation7], 4
      %s1808 = int_to_ptr.vmem [resolvable:$true] %s1807
      %s1809 = sshll.u32 %s8, 4
      %s1810 = int_to_ptr.hbm [resolvable:$true] %s1809
      %1815 = dma.vmem_to_hbm [thread:$0]  %s1808, 512, %s1810, [#allocation4], 128, 128, 8
    $region45: #{tpu_custom_call.1} parent=1 // pred_fallthru
      _
    // Predicated region
    $region46: #{tpu_custom_call.1} parent=1 // pred_check
      _
    $region47: #{tpu_custom_call.1} parent=1 // pred_check_branch
      %1817 = sbr.rel (0) target = $region49
    $region48: #{tpu_custom_call.1} parent=1 // pred_region
      %1819 = dma.done [#allocation4], 512
    $region49: #{tpu_custom_call.1} parent=1 // pred_fallthru
      _
    %1820 = vsyncpa [#allocation3], 1
    %1821 = vsyncpa [#allocation6], 1
    %1822 = vsyncpa [#allocation4], 1

</llo_original>
